<compile_context>
chip_gen: v5e
topology: v5e:2x2
jax: 0.10.0
libtpu: 0.0.40
codegen_flags: <defaults>
</compile_context>

<pallas_src>
import itertools

import numpy as np

import jax
import jax.numpy as jnp
from jax import lax
from jax.experimental import pallas as pl
from jax.experimental.pallas import tpu as pltpu

VOCAB = 128    # vocab_size
HIDDEN = 32    # complex hidden / embedding dim
LANE = 128     # packed hidden width padded to a full lane tile (2*HIDDEN=64 -> 128)

_VMEM = pl.BlockSpec(memory_space=pltpu.MemorySpace.VMEM)
_PREC = lax.Precision.HIGHEST


# ------------------------------ Pallas kernel ------------------------------- #

def _fused_rnn_kernel(x_ref, h0_ref, w_ref, et_ref, probs_ref, hall_ref):
    """Fused packed-complex RNN LM.

    x_ref    : (T, B, 128)  packed lane-padded [xr|xi|0] embeddings per step
    h0_ref   : (B, 128)     packed lane-padded initial state
    w_ref    : (128, 128)   packed recurrent block [[Wr,Wi],[-Wi,Wr]] zero-padded
    et_ref   : (128, V)     packed lane-padded tied embedding [Er|Ei|0]^T
    probs_ref: (T*B, V)     softmax(h_t . conj(E)^T .real) for every step row
    hall_ref : (T*B, 128)   all hidden states (packed), for the non-tied path
    """
    T, B, _ = x_ref.shape
    w = w_ref[...]
    et = et_ref[...]

    # Static unroll over time; h stays in registers (no per-step VMEM round-trip).
    h = h0_ref[...]
    hs = []
    for t in range(T):                                    # T is compile-time static
        h = jnp.tanh(x_ref[t] +
                     jnp.dot(h, w, preferred_element_type=jnp.float32,
                             precision=_PREC))
        hs.append(h)

    h_all = jnp.concatenate(hs, axis=0)                   # (T*B, 128) register values
    hall_ref[...] = h_all                                  # single full-lane store

    # Batched weight-tied logits + exact softmax over all T*B rows at once.
    logits = jnp.dot(h_all, et, preferred_element_type=jnp.float32,
                     precision=_PREC)                      # (T*B, V), V=128 lane-dense
    m = jnp.max(logits, axis=-1, keepdims=True)
    e = jnp.exp(logits - m)
    s = jnp.sum(e, axis=-1, keepdims=True)
    probs_ref[...] = e / s


def fused_rnn_lm(x_all, h0, w_block, emb_t):
    """x_all (T,B,128), h0 (B,128), w_block (128,128), emb_t (128,V) -> probs, h_all."""
    T, B, DP = x_all.shape
    V = emb_t.shape[1]
    return pl.pallas_call(
        _fused_rnn_kernel,
        out_shape=(jax.ShapeDtypeStruct((T * B, V), jnp.float32),
                   jax.ShapeDtypeStruct((T * B, DP), jnp.float32)),
        in_specs=[_VMEM, _VMEM, _VMEM, _VMEM],
        out_specs=(_VMEM, _VMEM),
    )(x_all, h0, w_block, emb_t)


@jax.jit
def packed_forward(x_tok, row_mask, labels_tok, h0, w_block, emb_pad, emb_t_pad):
    """Vectorized gather + fused kernel + one-hot labels, all under one jit."""
    T, B = x_tok.shape
    DP = emb_pad.shape[1]
    V = emb_t_pad.shape[1]
    # One gather for ALL timesteps; padded rows masked to zero embeddings.
    x_all = emb_pad[x_tok] * row_mask[..., None]           # (T, B, 128)
    h0b = jnp.broadcast_to(h0, (B, DP))
    probs_flat, h_flat = fused_rnn_lm(x_all, h0b, w_block, emb_t_pad)
    probs = probs_flat.reshape(T, B, V)
    h_all = h_flat.reshape(T, B, DP)
    labels_oh = jax.nn.one_hot(labels_tok, V, dtype=jnp.float32)
    return probs, h_all, labels_oh


# ------------------------ synthetic complex RNN model ---------------------- #

class ComplexRNNModel:
    """Minimal complex-valued LM storing parameters as packed float32 planes."""

    def __init__(self, vocab_size, hidden, key):
        self.vocab_size = vocab_size
        self.hidden = hidden
        D2 = 2 * hidden
        k1, k2, k3, k4, k5, k6 = jax.random.split(key, 6)
        s = 0.1
        er = s * jax.random.normal(k1, (vocab_size, hidden), jnp.float32)
        ei = s * jax.random.normal(k2, (vocab_size, hidden), jnp.float32)
        wr = s * jax.random.normal(k3, (hidden, hidden), jnp.float32)
        wi = s * jax.random.normal(k4, (hidden, hidden), jnp.float32)
        h0r = s * jax.random.normal(k5, (1, hidden), jnp.float32)
        h0i = s * jax.random.normal(k6, (1, hidden), jnp.float32)

        # Packed planes, assembled ONCE and zero-padded to 128 lanes so every
        # in-kernel tensor is lane-dense (no masked stores).
        self.emb_packed = jnp.concatenate([er, ei], axis=1)                 # (V, 2D)
        self.emb_padded = jnp.pad(self.emb_packed, ((0, 0), (0, LANE - D2)))  # (V,128)
        self.emb_t_padded = jnp.asarray(self.emb_padded.T)                  # (128, V)
        w_block = jnp.block([[wr, wi], [-wi, wr]])                          # (2D, 2D)
        self.w_block_padded = jnp.pad(w_block, ((0, LANE - D2), (0, LANE - D2)))
        self.h0_packed = jnp.concatenate([h0r, h0i], axis=1)                # (1, 2D)
        self.h0_padded = jnp.pad(self.h0_packed, ((0, 0), (0, LANE - D2)))  # (1, 128)
        # raw planes kept for the pure-JAX reference path
        self.wh_r, self.wh_i = wr, wi

    # --- complex-typed API kept for interface compatibility (cold paths) ---
    def initial_states(self):
        D = self.hidden
        return {"h": [lax.complex(self.h0_packed[:, :D], self.h0_packed[:, D:])]}

    def all_word_embeddings(self):
        D = self.hidden
        return lax.complex(self.emb_packed[:, :D], self.emb_packed[:, D:])

    def embedding(self, tokens):
        D = self.hidden
        x = self.emb_packed[tokens]
        return lax.complex(x[:, :D], x[:, D:])


# ------------------------------- RNN wrapper -------------------------------- #

class RNN:
    def __init__(self, model, weight_tying=True):
        self.model = model
        self.weight_tying = weight_tying

    def forward(self, data, batch_sizes):
        D = self.model.hidden
        T = len(batch_sizes) - 1
        max_b = max(batch_sizes[1:])
        B_MAX = max(8, ((max_b + 7) // 8) * 8)        # sublane-aligned padded batch
        accum = list(itertools.accumulate(batch_sizes, initial=0))

        # Vectorized host packing: one (T, B_MAX) token matrix + validity mask,
        # built with numpy (batch_sizes are host ints -> static slices).
        data_np = np.asarray(jax.device_get(data))
        x_tok = np.zeros((T, B_MAX), dtype=np.int32)
        labels_tok = np.zeros((T, B_MAX), dtype=np.int32)
        row_mask = np.zeros((T, B_MAX), dtype=np.float32)
        for t in range(T):
            bs, nb = batch_sizes[t], batch_sizes[t + 1]
            x_tok[t, :nb] = data_np[accum[t]:accum[t] + nb]
            labels_tok[t, :nb] = data_np[accum[t] + bs:accum[t] + bs + nb]
            row_mask[t, :nb] = 1.0

        # Single jitted call: gather + fused Pallas kernel + one-hot labels.
        probs, h_all, labels_oh = packed_forward(
            jnp.asarray(x_tok), jnp.asarray(row_mask), jnp.asarray(labels_tok),
            self.model.h0_padded, self.model.w_block_padded,
            self.model.emb_padded, self.model.emb_t_padded)

        for t in range(T):
            nb = batch_sizes[t + 1]
            if self.weight_tying:
                yield probs[t, :nb], labels_oh[t, :nb]
            else:
                # Non-tied path: return the complex hidden state + label embeddings.
                h_t = h_all[t, :nb]
                predicts = lax.complex(h_t[:, :D], h_t[:, D:2 * D])
                labels = data[accum[t] + batch_sizes[t]:
                              accum[t] + batch_sizes[t] + nb]
                yield predicts, self.model.embedding(labels)


# --------------------------- pure-JAX reference ------------------------------ #

def reference_forward(model, data, batch_sizes):
    """Direct port of the PyTorch forward semantics (per-step, unfused)."""
    D = model.hidden
    Er, Ei = model.emb_packed[:, :D], model.emb_packed[:, D:]
    Wr, Wi = model.wh_r, model.wh_i
    h = jnp.broadcast_to(model.h0_packed, (batch_sizes[1], 2 * D))
    outs, accum = [], 0
    for t in range(len(batch_sizes) - 1):
        bs, nb = batch_sizes[t], batch_sizes[t + 1]
        x = model.emb_packed[data[accum:accum + nb]]
        h = h[:nb]
        hr, hi = h[:, :D], h[:, D:]
        xr, xi = x[:, :D], x[:, D:]
        nhr = jnp.tanh(xr + hr @ Wr - hi @ Wi)
        nhi = jnp.tanh(xi + hr @ Wi + hi @ Wr)
        h = jnp.concatenate([nhr, nhi], axis=1)
        logit = nhr @ Er.T + nhi @ Ei.T
        probs = jax.nn.softmax(logit, axis=-1)
        labels = data[accum + bs: accum + bs + nb]
        outs.append((probs, jax.nn.one_hot(labels, model.vocab_size,
                                           dtype=jnp.float32)))
        accum += bs
    return outs


# ---------------------------------- main ------------------------------------ #

if __name__ == "__main__":
    key = jax.random.PRNGKey(0)
    kd, km = jax.random.split(key)

    batch_sizes = [4, 4, 3, 2, 2]             # packed-sequence batch sizes (host ints)
    total = sum(batch_sizes)
    data = jax.random.randint(kd, (total,), 0, VOCAB, dtype=jnp.int32)

    model = ComplexRNNModel(VOCAB, HIDDEN, km)
    rnn = RNN(model, weight_tying=True)

    outputs = list(rnn.forward(data, batch_sizes))
    refs = reference_forward(model, data, batch_sizes)

    assert len(outputs) == len(refs)
    for (probs, labels_oh), (ref_probs, ref_labels) in zip(outputs, refs):
        probs = jax.block_until_ready(probs)
        labels_oh = jax.block_until_ready(labels_oh)
        assert probs.shape[-1] == VOCAB and labels_oh.shape[-1] == VOCAB
        # exact softmax rows sum to 1
        assert jnp.allclose(jnp.sum(probs, axis=-1), 1.0, atol=1e-4)
        # matches the unfused per-step reference
        assert jnp.allclose(probs, ref_probs, atol=2e-3, rtol=2e-3)
        assert jnp.allclose(labels_oh, ref_labels)

    print("KERNEL_OK")
</pallas_src>

<mosaic_0001>
module attributes {stable_mosaic.version = 11 : i64} {
  func.func @_fused_rnn_kernel(%arg0: memref<4x8x128xf32, #tpu.memory_space<vmem>>, %arg1: memref<8x128xf32, #tpu.memory_space<vmem>>, %arg2: memref<128x128xf32, #tpu.memory_space<vmem>>, %arg3: memref<128x128xf32, #tpu.memory_space<vmem>>, %arg4: memref<32x128xf32, #tpu.memory_space<vmem>>, %arg5: memref<32x128xf32, #tpu.memory_space<vmem>>) attributes {dimension_semantics = [], scalar_prefetch = 0 : i64, scratch_operands = 0 : i64, tpu.core_type = #tpu.core_type<tc>} {
    %c0 = arith.constant 0 : index
    %c0_0 = arith.constant 0 : index
    %0 = vector.load %arg2[%c0, %c0_0] : memref<128x128xf32, #tpu.memory_space<vmem>>, vector<128x128xf32>
    %c0_1 = arith.constant 0 : index
    %c0_2 = arith.constant 0 : index
    %1 = vector.load %arg3[%c0_1, %c0_2] : memref<128x128xf32, #tpu.memory_space<vmem>>, vector<128x128xf32>
    %c0_3 = arith.constant 0 : index
    %c0_4 = arith.constant 0 : index
    %2 = vector.load %arg1[%c0_3, %c0_4] : memref<8x128xf32, #tpu.memory_space<vmem>>, vector<8x128xf32>
    %c0_5 = arith.constant 0 : index
    %c0_6 = arith.constant 0 : index
    %c0_7 = arith.constant 0 : index
    %3 = vector.load %arg0[%c0_5, %c0_6, %c0_7] : memref<4x8x128xf32, #tpu.memory_space<vmem>>, vector<1x8x128xf32>
    %4 = vector.shape_cast %3 : vector<1x8x128xf32> to vector<8x128xf32>
    %cst = arith.constant dense<0.000000e+00> : vector<8x128xf32>
    %5 = tpu.matmul %2, %0, %cst {dimension_numbers = #tpu.dot_dimension_numbers<[1], [0], [0], [1], [0, 0, 1, 1], [], []>, precision = #tpu.contract_precision<fp32>} : vector<8x128xf32>, vector<128x128xf32>, vector<8x128xf32> -> vector<8x128xf32>
    %6 = arith.addf %4, %5 : vector<8x128xf32>
    %7 = math.tanh %6 : vector<8x128xf32>
    %c1 = arith.constant 1 : index
    %c0_8 = arith.constant 0 : index
    %c0_9 = arith.constant 0 : index
    %8 = vector.load %arg0[%c1, %c0_8, %c0_9] : memref<4x8x128xf32, #tpu.memory_space<vmem>>, vector<1x8x128xf32>
    %9 = vector.shape_cast %8 : vector<1x8x128xf32> to vector<8x128xf32>
    %cst_10 = arith.constant dense<0.000000e+00> : vector<8x128xf32>
    %10 = tpu.matmul %7, %0, %cst_10 {dimension_numbers = #tpu.dot_dimension_numbers<[1], [0], [0], [1], [0, 0, 1, 1], [], []>, precision = #tpu.contract_precision<fp32>} : vector<8x128xf32>, vector<128x128xf32>, vector<8x128xf32> -> vector<8x128xf32>
    %11 = arith.addf %9, %10 : vector<8x128xf32>
    %12 = math.tanh %11 : vector<8x128xf32>
    %c2 = arith.constant 2 : index
    %c0_11 = arith.constant 0 : index
    %c0_12 = arith.constant 0 : index
    %13 = vector.load %arg0[%c2, %c0_11, %c0_12] : memref<4x8x128xf32, #tpu.memory_space<vmem>>, vector<1x8x128xf32>
    %14 = vector.shape_cast %13 : vector<1x8x128xf32> to vector<8x128xf32>
    %cst_13 = arith.constant dense<0.000000e+00> : vector<8x128xf32>
    %15 = tpu.matmul %12, %0, %cst_13 {dimension_numbers = #tpu.dot_dimension_numbers<[1], [0], [0], [1], [0, 0, 1, 1], [], []>, precision = #tpu.contract_precision<fp32>} : vector<8x128xf32>, vector<128x128xf32>, vector<8x128xf32> -> vector<8x128xf32>
    %16 = arith.addf %14, %15 : vector<8x128xf32>
    %17 = math.tanh %16 : vector<8x128xf32>
    %c3 = arith.constant 3 : index
    %c0_14 = arith.constant 0 : index
    %c0_15 = arith.constant 0 : index
    %18 = vector.load %arg0[%c3, %c0_14, %c0_15] : memref<4x8x128xf32, #tpu.memory_space<vmem>>, vector<1x8x128xf32>
    %19 = vector.shape_cast %18 : vector<1x8x128xf32> to vector<8x128xf32>
    %cst_16 = arith.constant dense<0.000000e+00> : vector<8x128xf32>
    %20 = tpu.matmul %17, %0, %cst_16 {dimension_numbers = #tpu.dot_dimension_numbers<[1], [0], [0], [1], [0, 0, 1, 1], [], []>, precision = #tpu.contract_precision<fp32>} : vector<8x128xf32>, vector<128x128xf32>, vector<8x128xf32> -> vector<8x128xf32>
    %21 = arith.addf %19, %20 : vector<8x128xf32>
    %22 = math.tanh %21 : vector<8x128xf32>
    %23 = tpu.concatenate %7, %12, %17, %22 in 0 : vector<8x128xf32>, vector<8x128xf32>, vector<8x128xf32>, vector<8x128xf32> -> vector<32x128xf32>
    %c0_17 = arith.constant 0 : index
    %c0_18 = arith.constant 0 : index
    %24 = vector.load %arg5[%c0_17, %c0_18] : memref<32x128xf32, #tpu.memory_space<vmem>>, vector<32x128xf32>
    tpu.vector_store %arg5[%c0_17, %c0_18], %23 {strides = array<i32>} : memref<32x128xf32, #tpu.memory_space<vmem>>, vector<32x128xf32>,
    %cst_19 = arith.constant dense<0.000000e+00> : vector<32x128xf32>
    %25 = tpu.matmul %23, %1, %cst_19 {dimension_numbers = #tpu.dot_dimension_numbers<[1], [0], [0], [1], [0, 0, 1, 1], [], []>, precision = #tpu.contract_precision<fp32>} : vector<32x128xf32>, vector<128x128xf32>, vector<32x128xf32> -> vector<32x128xf32>
    %cst_20 = arith.constant dense<0xFF800000> : vector<32xf32>
    %26 = vector.multi_reduction <maximumf>, %25, %cst_20 [1] : vector<32x128xf32> to vector<32xf32>
    %27 = vector.shape_cast %26 : vector<32xf32> to vector<32x1xf32>
    %28 = vector.broadcast %27 : vector<32x1xf32> to vector<32x128xf32>
    %29 = arith.subf %25, %28 : vector<32x128xf32>
    %30 = math.exp %29 : vector<32x128xf32>
    %cst_21 = arith.constant dense<0.000000e+00> : vector<32xf32>
    %31 = vector.multi_reduction <add>, %30, %cst_21 [1] : vector<32x128xf32> to vector<32xf32>
    %32 = vector.shape_cast %31 : vector<32xf32> to vector<32x1xf32>
    %33 = vector.broadcast %32 : vector<32x1xf32> to vector<32x128xf32>
    %34 = arith.divf %30, %33 : vector<32x128xf32>
    %c0_22 = arith.constant 0 : index
    %c0_23 = arith.constant 0 : index
    %35 = vector.load %arg4[%c0_22, %c0_23] : memref<32x128xf32, #tpu.memory_space<vmem>>, vector<32x128xf32>
    tpu.vector_store %arg4[%c0_22, %c0_23], %34 {strides = array<i32>} : memref<32x128xf32, #tpu.memory_space<vmem>>, vector<32x128xf32>,
    return
  }
}

</mosaic_0001>

<llo_original>
// kernel: packed_forward.1
$region0: #{packed_forward.1}
  #allocation0 [shape = 'u32[]', space=smem, size = 0x4, offset = 0x4, fixed_abs, tag = 'smem constant byte address 0x4 - core index']
  #allocation1 [shape = 'u32[72,128]{1,0:T(1,128)}', space=vmem, size = 0x9000, scoped, tag = 'internal scratch']
  %s0 = inlined_call_operand.vmem [shape: f32[4,8,128], index: 0, kind: input, shape index: {}]
  %s1 = inlined_call_operand.vmem [shape: f32[8,128], index: 1, kind: input, shape index: {}]
  %s2 = inlined_call_operand.vmem [shape: f32[128,128], index: 2, kind: input, shape index: {}]
  %s3 = inlined_call_operand.vmem [shape: f32[128,128], index: 3, kind: input, shape index: {}]
  %s4 = inlined_call_operand.hbm [shape: f32[32,128], index: 4, kind: output, shape index: {0}]
  %s5 = inlined_call_operand.hbm [shape: f32[32,128], index: 5, kind: output, shape index: {1}]
  %6 = xla_tuple %s4, %s5
  %s7 = sld [smem:[#allocation0]]
  $region34: #{packed_forward.1} parent=0
    _
  %s9 = ssub.s32 1, %s7
  %s10 = scalar_select 0, %s9, %s7
  $region1: #{packed_forward.1} parent=0
    #allocation2 [shape = 'u8[16384]{0}', space=vmem, size = 0x4000, scoped, tag = 'output window, operand 0, single buffered']
    #allocation3 [shape = 's32[1]{0}', space=sflag, size = 0x4, scoped, tag = 'scoped memory for packed_forward.1']
    #allocation4 [shape = 'u8[16384]{0}', space=vmem, size = 0x4000, scoped, tag = 'output window, operand 1, single buffered']
    #allocation5 [shape = 's32[1]{0}', space=sflag, size = 0x4, scoped, tag = 'scoped memory for packed_forward.1']
    %11 = vsyncpa [#allocation3], 0
    %12 = vsyncpa [#allocation5], 0
    // Predicated region
    $region2: #{packed_forward.1} parent=1 // pred_check
      _
    $region3: #{packed_forward.1} parent=1 // pred_check_branch
      %14 = sbr.rel (0) target = $region5
    $region4: #{packed_forward.1} parent=1 // pred_region
      _
    $region5: #{packed_forward.1} parent=1 // pred_fallthru
      _
    // Predicated region
    $region6: #{packed_forward.1} parent=1 // pred_check
      _
    $region7: #{packed_forward.1} parent=1 // pred_check_branch
      %16 = sbr.rel (0) target = $region9
    $region8: #{packed_forward.1} parent=1 // pred_region
      _
    $region9: #{packed_forward.1} parent=1 // pred_fallthru
      _
    // Predicated region
    $region10: #{packed_forward.1} parent=1 // pred_check
      _
    $region11: #{packed_forward.1} parent=1 // pred_check_branch
      %18 = sbr.rel (0) target = $region13
    $region12: #{packed_forward.1} parent=1 // pred_region
      _
    $region13: #{packed_forward.1} parent=1 // pred_fallthru
      _
    // Predicated region
    $region14: #{packed_forward.1} parent=1 // pred_check
      _
    $region15: #{packed_forward.1} parent=1 // pred_check_branch
      %20 = sbr.rel (0) target = $region17
    $region16: #{packed_forward.1} parent=1 // pred_region
      _
    $region17: #{packed_forward.1} parent=1 // pred_fallthru
      _
    %v21 = vld [vmem:[%s2] sm:$0xff]
    %v22 = vld [vmem:[%s2 + $0x8] sm:$0xff]
    %v23 = vld [vmem:[%s2 + $0x10] sm:$0xff]
    %v24 = vld [vmem:[%s2 + $0x18] sm:$0xff]
    %v25 = vld [vmem:[%s2 + $0x20] sm:$0xff]
    %v26 = vld [vmem:[%s2 + $0x28] sm:$0xff]
    %v27 = vld [vmem:[%s2 + $0x30] sm:$0xff]
    %v28 = vld [vmem:[%s2 + $0x38] sm:$0xff]
    %v29 = vld [vmem:[%s2 + $0x40] sm:$0xff]
    %v30 = vld [vmem:[%s2 + $0x48] sm:$0xff]
    %v31 = vld [vmem:[%s2 + $0x50] sm:$0xff]
    %v32 = vld [vmem:[%s2 + $0x58] sm:$0xff]
    %v33 = vld [vmem:[%s2 + $0x60] sm:$0xff]
    %v34 = vld [vmem:[%s2 + $0x68] sm:$0xff]
    %v35 = vld [vmem:[%s2 + $0x70] sm:$0xff]
    %v36 = vld [vmem:[%s2 + $0x78] sm:$0xff]
    %v37 = vld [vmem:[%s3] sm:$0xff]
    %v38 = vld [vmem:[%s3 + $0x8] sm:$0xff]
    %v39 = vld [vmem:[%s3 + $0x10] sm:$0xff]
    %v40 = vld [vmem:[%s3 + $0x18] sm:$0xff]
    %v41 = vld [vmem:[%s3 + $0x20] sm:$0xff]
    %v42 = vld [vmem:[%s3 + $0x28] sm:$0xff]
    %v43 = vld [vmem:[%s3 + $0x30] sm:$0xff]
    %v44 = vld [vmem:[%s3 + $0x38] sm:$0xff]
    %v45 = vld [vmem:[%s3 + $0x40] sm:$0xff]
    %v46 = vld [vmem:[%s3 + $0x48] sm:$0xff]
    %v47 = vld [vmem:[%s3 + $0x50] sm:$0xff]
    %v48 = vld [vmem:[%s3 + $0x58] sm:$0xff]
    %v49 = vld [vmem:[%s3 + $0x60] sm:$0xff]
    %v50 = vld [vmem:[%s3 + $0x68] sm:$0xff]
    %v51 = vld [vmem:[%s3 + $0x70] sm:$0xff]
    %v52 = vld [vmem:[%s3 + $0x78] sm:$0xff]
    %v53 = vld [vmem:[%s1] sm:$0xff]
    %v54 = vld [vmem:[%s0] sm:$0xff]
    %v55 = vand.u32 %v36, 4294901760
    %56 = vmatpush.msra.mxu0 %v55
    %v57 = vand.u32 %v35, 4294901760
    %58 = vmatpush.msra.mxu0 %v57
    %v59 = vand.u32 %v34, 4294901760
    %60 = vmatpush.msra.mxu0 %v59
    %v61 = vand.u32 %v33, 4294901760
    %62 = vmatpush.msra.mxu0 %v61
    %v63 = vand.u32 %v32, 4294901760
    %64 = vmatpush.msra.mxu0 %v63
    %v65 = vand.u32 %v31, 4294901760
    %66 = vmatpush.msra.mxu0 %v65
    %v67 = vand.u32 %v30, 4294901760
    %68 = vmatpush.msra.mxu0 %v67
    %v69 = vand.u32 %v29, 4294901760
    %70 = vmatpush.msra.mxu0 %v69
    %v71 = vand.u32 %v28, 4294901760
    %72 = vmatpush.msra.mxu0 %v71
    %v73 = vand.u32 %v27, 4294901760
    %74 = vmatpush.msra.mxu0 %v73
    %v75 = vand.u32 %v26, 4294901760
    %76 = vmatpush.msra.mxu0 %v75
    %v77 = vand.u32 %v25, 4294901760
    %78 = vmatpush.msra.mxu0 %v77
    %v79 = vand.u32 %v24, 4294901760
    %80 = vmatpush.msra.mxu0 %v79
    %v81 = vand.u32 %v23, 4294901760
    %82 = vmatpush.msra.mxu0 %v81
    %v83 = vand.u32 %v22, 4294901760
    %84 = vmatpush.msra.mxu0 %v83
    %v85 = vand.u32 %v21, 4294901760
    %86 = vmatpush.msra.mxu0 %v85
    %v87 = vand.u32 %v53, 4294901760
    %v88 = vsub.f32 %v53, %v87
    %v89 = vand.u32 %v88, 4294901760
    %v90 = vsub.f32 %v88, %v89
    %v91 = vand.u32 %v90, 4294901760
    %92 = vmatmul.f32.gmra.mxu0 %v91
    %v93 = vpop.f32.mrf.mxu0
    %v94 = vadd.f32 0.0, %v93
    %95 = vdwg.mxu0
    %v96 = vand.u32 %v36, 4294901760
    %v97 = vsub.f32 %v36, %v96
    %v98 = vand.u32 %v97, 4294901760
    %v99 = vsub.f32 %v97, %v98
    %v100 = vand.u32 %v99, 4294901760
    %101 = vmatpush.msra.mxu0 %v100
    %v102 = vand.u32 %v35, 4294901760
    %v103 = vsub.f32 %v35, %v102
    %v104 = vand.u32 %v103, 4294901760
    %v105 = vsub.f32 %v103, %v104
    %v106 = vand.u32 %v105, 4294901760
    %107 = vmatpush.msra.mxu0 %v106
    %v108 = vand.u32 %v34, 4294901760
    %v109 = vsub.f32 %v34, %v108
    %v110 = vand.u32 %v109, 4294901760
    %v111 = vsub.f32 %v109, %v110
    %v112 = vand.u32 %v111, 4294901760
    %113 = vmatpush.msra.mxu0 %v112
    %v114 = vand.u32 %v33, 4294901760
    %v115 = vsub.f32 %v33, %v114
    %v116 = vand.u32 %v115, 4294901760
    %v117 = vsub.f32 %v115, %v116
    %v118 = vand.u32 %v117, 4294901760
    %119 = vmatpush.msra.mxu0 %v118
    %v120 = vand.u32 %v32, 4294901760
    %v121 = vsub.f32 %v32, %v120
    %v122 = vand.u32 %v121, 4294901760
    %v123 = vsub.f32 %v121, %v122
    %v124 = vand.u32 %v123, 4294901760
    %125 = vmatpush.msra.mxu0 %v124
    %v126 = vand.u32 %v31, 4294901760
    %v127 = vsub.f32 %v31, %v126
    %v128 = vand.u32 %v127, 4294901760
    %v129 = vsub.f32 %v127, %v128
    %v130 = vand.u32 %v129, 4294901760
    %131 = vmatpush.msra.mxu0 %v130
    %v132 = vand.u32 %v30, 4294901760
    %v133 = vsub.f32 %v30, %v132
    %v134 = vand.u32 %v133, 4294901760
    %v135 = vsub.f32 %v133, %v134
    %v136 = vand.u32 %v135, 4294901760
    %137 = vmatpush.msra.mxu0 %v136
    %v138 = vand.u32 %v29, 4294901760
    %v139 = vsub.f32 %v29, %v138
    %v140 = vand.u32 %v139, 4294901760
    %v141 = vsub.f32 %v139, %v140
    %v142 = vand.u32 %v141, 4294901760
    %143 = vmatpush.msra.mxu0 %v142
    %v144 = vand.u32 %v28, 4294901760
    %v145 = vsub.f32 %v28, %v144
    %v146 = vand.u32 %v145, 4294901760
    %v147 = vsub.f32 %v145, %v146
    %v148 = vand.u32 %v147, 4294901760
    %149 = vmatpush.msra.mxu0 %v148
    %v150 = vand.u32 %v27, 4294901760
    %v151 = vsub.f32 %v27, %v150
    %v152 = vand.u32 %v151, 4294901760
    %v153 = vsub.f32 %v151, %v152
    %v154 = vand.u32 %v153, 4294901760
    %155 = vmatpush.msra.mxu0 %v154
    %v156 = vand.u32 %v26, 4294901760
    %v157 = vsub.f32 %v26, %v156
    %v158 = vand.u32 %v157, 4294901760
    %v159 = vsub.f32 %v157, %v158
    %v160 = vand.u32 %v159, 4294901760
    %161 = vmatpush.msra.mxu0 %v160
    %v162 = vand.u32 %v25, 4294901760
    %v163 = vsub.f32 %v25, %v162
    %v164 = vand.u32 %v163, 4294901760
    %v165 = vsub.f32 %v163, %v164
    %v166 = vand.u32 %v165, 4294901760
    %167 = vmatpush.msra.mxu0 %v166
    %v168 = vand.u32 %v24, 4294901760
    %v169 = vsub.f32 %v24, %v168
    %v170 = vand.u32 %v169, 4294901760
    %v171 = vsub.f32 %v169, %v170
    %v172 = vand.u32 %v171, 4294901760
    %173 = vmatpush.msra.mxu0 %v172
    %v174 = vand.u32 %v23, 4294901760
    %v175 = vsub.f32 %v23, %v174
    %v176 = vand.u32 %v175, 4294901760
    %v177 = vsub.f32 %v175, %v176
    %v178 = vand.u32 %v177, 4294901760
    %179 = vmatpush.msra.mxu0 %v178
    %v180 = vand.u32 %v22, 4294901760
    %v181 = vsub.f32 %v22, %v180
    %v182 = vand.u32 %v181, 4294901760
    %v183 = vsub.f32 %v181, %v182
    %v184 = vand.u32 %v183, 4294901760
    %185 = vmatpush.msra.mxu0 %v184
    %v186 = vand.u32 %v21, 4294901760
    %v187 = vsub.f32 %v21, %v186
    %v188 = vand.u32 %v187, 4294901760
    %v189 = vsub.f32 %v187, %v188
    %v190 = vand.u32 %v189, 4294901760
    %191 = vmatpush.msra.mxu0 %v190
    %v192 = vand.u32 %v53, 4294901760
    %193 = vmatmul.f32.gmra.mxu0 %v192
    %v194 = vpop.f32.mrf.mxu0
    %v195 = vadd.f32 %v94, %v194
    %196 = vdwg.mxu0
    %v197 = vand.u32 %v36, 4294901760
    %v198 = vsub.f32 %v36, %v197
    %199 = vmatpush.msra.mxu0 %v198
    %v200 = vand.u32 %v35, 4294901760
    %v201 = vsub.f32 %v35, %v200
    %202 = vmatpush.msra.mxu0 %v201
    %v203 = vand.u32 %v34, 4294901760
    %v204 = vsub.f32 %v34, %v203
    %205 = vmatpush.msra.mxu0 %v204
    %v206 = vand.u32 %v33, 4294901760
    %v207 = vsub.f32 %v33, %v206
    %208 = vmatpush.msra.mxu0 %v207
    %v209 = vand.u32 %v32, 4294901760
    %v210 = vsub.f32 %v32, %v209
    %211 = vmatpush.msra.mxu0 %v210
    %v212 = vand.u32 %v31, 4294901760
    %v213 = vsub.f32 %v31, %v212
    %214 = vmatpush.msra.mxu0 %v213
    %v215 = vand.u32 %v30, 4294901760
    %v216 = vsub.f32 %v30, %v215
    %217 = vmatpush.msra.mxu0 %v216
    %v218 = vand.u32 %v29, 4294901760
    %v219 = vsub.f32 %v29, %v218
    %220 = vmatpush.msra.mxu0 %v219
    %v221 = vand.u32 %v28, 4294901760
    %v222 = vsub.f32 %v28, %v221
    %223 = vmatpush.msra.mxu0 %v222
    %v224 = vand.u32 %v27, 4294901760
    %v225 = vsub.f32 %v27, %v224
    %226 = vmatpush.msra.mxu0 %v225
    %v227 = vand.u32 %v26, 4294901760
    %v228 = vsub.f32 %v26, %v227
    %229 = vmatpush.msra.mxu0 %v228
    %v230 = vand.u32 %v25, 4294901760
    %v231 = vsub.f32 %v25, %v230
    %232 = vmatpush.msra.mxu0 %v231
    %v233 = vand.u32 %v24, 4294901760
    %v234 = vsub.f32 %v24, %v233
    %235 = vmatpush.msra.mxu0 %v234
    %v236 = vand.u32 %v23, 4294901760
    %v237 = vsub.f32 %v23, %v236
    %238 = vmatpush.msra.mxu0 %v237
    %v239 = vand.u32 %v22, 4294901760
    %v240 = vsub.f32 %v22, %v239
    %241 = vmatpush.msra.mxu0 %v240
    %v242 = vand.u32 %v21, 4294901760
    %v243 = vsub.f32 %v21, %v242
    %244 = vmatpush.msra.mxu0 %v243
    %v245 = vand.u32 %v53, 4294901760
    %v246 = vsub.f32 %v53, %v245
    %247 = vmatmul.f32.gmra.mxu0 %v246
    %v248 = vpop.f32.mrf.mxu0
    %v249 = vadd.f32 %v195, %v248
    %250 = vdwg.mxu0
    %v251 = vand.u32 %v36, 4294901760
    %252 = vmatpush.msra.mxu0 %v251
    %v253 = vand.u32 %v35, 4294901760
    %254 = vmatpush.msra.mxu0 %v253
    %v255 = vand.u32 %v34, 4294901760
    %256 = vmatpush.msra.mxu0 %v255
    %v257 = vand.u32 %v33, 4294901760
    %258 = vmatpush.msra.mxu0 %v257
    %v259 = vand.u32 %v32, 4294901760
    %260 = vmatpush.msra.mxu0 %v259
    %v261 = vand.u32 %v31, 4294901760
    %262 = vmatpush.msra.mxu0 %v261
    %v263 = vand.u32 %v30, 4294901760
    %264 = vmatpush.msra.mxu0 %v263
    %v265 = vand.u32 %v29, 4294901760
    %266 = vmatpush.msra.mxu0 %v265
    %v267 = vand.u32 %v28, 4294901760
    %268 = vmatpush.msra.mxu0 %v267
    %v269 = vand.u32 %v27, 4294901760
    %270 = vmatpush.msra.mxu0 %v269
    %v271 = vand.u32 %v26, 4294901760
    %272 = vmatpush.msra.mxu0 %v271
    %v273 = vand.u32 %v25, 4294901760
    %274 = vmatpush.msra.mxu0 %v273
    %v275 = vand.u32 %v24, 4294901760
    %276 = vmatpush.msra.mxu0 %v275
    %v277 = vand.u32 %v23, 4294901760
    %278 = vmatpush.msra.mxu0 %v277
    %v279 = vand.u32 %v22, 4294901760
    %280 = vmatpush.msra.mxu0 %v279
    %v281 = vand.u32 %v21, 4294901760
    %282 = vmatpush.msra.mxu0 %v281
    %v283 = vand.u32 %v53, 4294901760
    %v284 = vsub.f32 %v53, %v283
    %v285 = vand.u32 %v284, 4294901760
    %286 = vmatmul.f32.gmra.mxu0 %v285
    %v287 = vpop.f32.mrf.mxu0
    %v288 = vadd.f32 %v249, %v287
    %289 = vdwg.mxu0
    %v290 = vand.u32 %v36, 4294901760
    %v291 = vsub.f32 %v36, %v290
    %v292 = vand.u32 %v291, 4294901760
    %293 = vmatpush.msra.mxu0 %v292
    %v294 = vand.u32 %v35, 4294901760
    %v295 = vsub.f32 %v35, %v294
    %v296 = vand.u32 %v295, 4294901760
    %297 = vmatpush.msra.mxu0 %v296
    %v298 = vand.u32 %v34, 4294901760
    %v299 = vsub.f32 %v34, %v298
    %v300 = vand.u32 %v299, 4294901760
    %301 = vmatpush.msra.mxu0 %v300
    %v302 = vand.u32 %v33, 4294901760
    %v303 = vsub.f32 %v33, %v302
    %v304 = vand.u32 %v303, 4294901760
    %305 = vmatpush.msra.mxu0 %v304
    %v306 = vand.u32 %v32, 4294901760
    %v307 = vsub.f32 %v32, %v306
    %v308 = vand.u32 %v307, 4294901760
    %309 = vmatpush.msra.mxu0 %v308
    %v310 = vand.u32 %v31, 4294901760
    %v311 = vsub.f32 %v31, %v310
    %v312 = vand.u32 %v311, 4294901760
    %313 = vmatpush.msra.mxu0 %v312
    %v314 = vand.u32 %v30, 4294901760
    %v315 = vsub.f32 %v30, %v314
    %v316 = vand.u32 %v315, 4294901760
    %317 = vmatpush.msra.mxu0 %v316
    %v318 = vand.u32 %v29, 4294901760
    %v319 = vsub.f32 %v29, %v318
    %v320 = vand.u32 %v319, 4294901760
    %321 = vmatpush.msra.mxu0 %v320
    %v322 = vand.u32 %v28, 4294901760
    %v323 = vsub.f32 %v28, %v322
    %v324 = vand.u32 %v323, 4294901760
    %325 = vmatpush.msra.mxu0 %v324
    %v326 = vand.u32 %v27, 4294901760
    %v327 = vsub.f32 %v27, %v326
    %v328 = vand.u32 %v327, 4294901760
    %329 = vmatpush.msra.mxu0 %v328
    %v330 = vand.u32 %v26, 4294901760
    %v331 = vsub.f32 %v26, %v330
    %v332 = vand.u32 %v331, 4294901760
    %333 = vmatpush.msra.mxu0 %v332
    %v334 = vand.u32 %v25, 4294901760
    %v335 = vsub.f32 %v25, %v334
    %v336 = vand.u32 %v335, 4294901760
    %337 = vmatpush.msra.mxu0 %v336
    %v338 = vand.u32 %v24, 4294901760
    %v339 = vsub.f32 %v24, %v338
    %v340 = vand.u32 %v339, 4294901760
    %341 = vmatpush.msra.mxu0 %v340
    %v342 = vand.u32 %v23, 4294901760
    %v343 = vsub.f32 %v23, %v342
    %v344 = vand.u32 %v343, 4294901760
    %345 = vmatpush.msra.mxu0 %v344
    %v346 = vand.u32 %v22, 4294901760
    %v347 = vsub.f32 %v22, %v346
    %v348 = vand.u32 %v347, 4294901760
    %349 = vmatpush.msra.mxu0 %v348
    %v350 = vand.u32 %v21, 4294901760
    %v351 = vsub.f32 %v21, %v350
    %v352 = vand.u32 %v351, 4294901760
    %353 = vmatpush.msra.mxu0 %v352
    %v354 = vand.u32 %v53, 4294901760
    %355 = vmatmul.f32.gmra.mxu0 %v354
    %v356 = vpop.f32.mrf.mxu0
    %v357 = vadd.f32 %v288, %v356
    %358 = vdwg.mxu0
    %v359 = vand.u32 %v36, 4294901760
    %360 = vmatpush.msra.mxu0 %v359
    %v361 = vand.u32 %v35, 4294901760
    %362 = vmatpush.msra.mxu0 %v361
    %v363 = vand.u32 %v34, 4294901760
    %364 = vmatpush.msra.mxu0 %v363
    %v365 = vand.u32 %v33, 4294901760
    %366 = vmatpush.msra.mxu0 %v365
    %v367 = vand.u32 %v32, 4294901760
    %368 = vmatpush.msra.mxu0 %v367
    %v369 = vand.u32 %v31, 4294901760
    %370 = vmatpush.msra.mxu0 %v369
    %v371 = vand.u32 %v30, 4294901760
    %372 = vmatpush.msra.mxu0 %v371
    %v373 = vand.u32 %v29, 4294901760
    %374 = vmatpush.msra.mxu0 %v373
    %v375 = vand.u32 %v28, 4294901760
    %376 = vmatpush.msra.mxu0 %v375
    %v377 = vand.u32 %v27, 4294901760
    %378 = vmatpush.msra.mxu0 %v377
    %v379 = vand.u32 %v26, 4294901760
    %380 = vmatpush.msra.mxu0 %v379
    %v381 = vand.u32 %v25, 4294901760
    %382 = vmatpush.msra.mxu0 %v381
    %v383 = vand.u32 %v24, 4294901760
    %384 = vmatpush.msra.mxu0 %v383
    %v385 = vand.u32 %v23, 4294901760
    %386 = vmatpush.msra.mxu0 %v385
    %v387 = vand.u32 %v22, 4294901760
    %388 = vmatpush.msra.mxu0 %v387
    %v389 = vand.u32 %v21, 4294901760
    %390 = vmatpush.msra.mxu0 %v389
    %v391 = vand.u32 %v53, 4294901760
    %392 = vmatmul.f32.gmra.mxu0 %v391
    %v393 = vpop.f32.mrf.mxu0
    %v394 = vadd.f32 %v357, %v393
    %395 = vdwg.mxu0
    %v396 = vadd.f32 %v54, %v394
    %v397 = vtanh.pop %v396
    %s398 = scalar_lea.vmem %s0, 8
    %v399 = vld [vmem:[%s398] sm:$0xff]
    %v400 = vand.u32 %v36, 4294901760
    %401 = vmatpush.msra.mxu0 %v400
    %v402 = vand.u32 %v35, 4294901760
    %403 = vmatpush.msra.mxu0 %v402
    %v404 = vand.u32 %v34, 4294901760
    %405 = vmatpush.msra.mxu0 %v404
    %v406 = vand.u32 %v33, 4294901760
    %407 = vmatpush.msra.mxu0 %v406
    %v408 = vand.u32 %v32, 4294901760
    %409 = vmatpush.msra.mxu0 %v408
    %v410 = vand.u32 %v31, 4294901760
    %411 = vmatpush.msra.mxu0 %v410
    %v412 = vand.u32 %v30, 4294901760
    %413 = vmatpush.msra.mxu0 %v412
    %v414 = vand.u32 %v29, 4294901760
    %415 = vmatpush.msra.mxu0 %v414
    %v416 = vand.u32 %v28, 4294901760
    %417 = vmatpush.msra.mxu0 %v416
    %v418 = vand.u32 %v27, 4294901760
    %419 = vmatpush.msra.mxu0 %v418
    %v420 = vand.u32 %v26, 4294901760
    %421 = vmatpush.msra.mxu0 %v420
    %v422 = vand.u32 %v25, 4294901760
    %423 = vmatpush.msra.mxu0 %v422
    %v424 = vand.u32 %v24, 4294901760
    %425 = vmatpush.msra.mxu0 %v424
    %v426 = vand.u32 %v23, 4294901760
    %427 = vmatpush.msra.mxu0 %v426
    %v428 = vand.u32 %v22, 4294901760
    %429 = vmatpush.msra.mxu0 %v428
    %v430 = vand.u32 %v21, 4294901760
    %431 = vmatpush.msra.mxu0 %v430
    %v432 = vand.u32 %v397, 4294901760
    %v433 = vsub.f32 %v397, %v432
    %v434 = vand.u32 %v433, 4294901760
    %v435 = vsub.f32 %v433, %v434
    %v436 = vand.u32 %v435, 4294901760
    %437 = vmatmul.f32.gmra.mxu0 %v436
    %v438 = vpop.f32.mrf.mxu0
    %v439 = vadd.f32 0.0, %v438
    %440 = vdwg.mxu0
    %v441 = vand.u32 %v36, 4294901760
    %v442 = vsub.f32 %v36, %v441
    %v443 = vand.u32 %v442, 4294901760
    %v444 = vsub.f32 %v442, %v443
    %v445 = vand.u32 %v444, 4294901760
    %446 = vmatpush.msra.mxu0 %v445
    %v447 = vand.u32 %v35, 4294901760
    %v448 = vsub.f32 %v35, %v447
    %v449 = vand.u32 %v448, 4294901760
    %v450 = vsub.f32 %v448, %v449
    %v451 = vand.u32 %v450, 4294901760
    %452 = vmatpush.msra.mxu0 %v451
    %v453 = vand.u32 %v34, 4294901760
    %v454 = vsub.f32 %v34, %v453
    %v455 = vand.u32 %v454, 4294901760
    %v456 = vsub.f32 %v454, %v455
    %v457 = vand.u32 %v456, 4294901760
    %458 = vmatpush.msra.mxu0 %v457
    %v459 = vand.u32 %v33, 4294901760
    %v460 = vsub.f32 %v33, %v459
    %v461 = vand.u32 %v460, 4294901760
    %v462 = vsub.f32 %v460, %v461
    %v463 = vand.u32 %v462, 4294901760
    %464 = vmatpush.msra.mxu0 %v463
    %v465 = vand.u32 %v32, 4294901760
    %v466 = vsub.f32 %v32, %v465
    %v467 = vand.u32 %v466, 4294901760
    %v468 = vsub.f32 %v466, %v467
    %v469 = vand.u32 %v468, 4294901760
    %470 = vmatpush.msra.mxu0 %v469
    %v471 = vand.u32 %v31, 4294901760
    %v472 = vsub.f32 %v31, %v471
    %v473 = vand.u32 %v472, 4294901760
    %v474 = vsub.f32 %v472, %v473
    %v475 = vand.u32 %v474, 4294901760
    %476 = vmatpush.msra.mxu0 %v475
    %v477 = vand.u32 %v30, 4294901760
    %v478 = vsub.f32 %v30, %v477
    %v479 = vand.u32 %v478, 4294901760
    %v480 = vsub.f32 %v478, %v479
    %v481 = vand.u32 %v480, 4294901760
    %482 = vmatpush.msra.mxu0 %v481
    %v483 = vand.u32 %v29, 4294901760
    %v484 = vsub.f32 %v29, %v483
    %v485 = vand.u32 %v484, 4294901760
    %v486 = vsub.f32 %v484, %v485
    %v487 = vand.u32 %v486, 4294901760
    %488 = vmatpush.msra.mxu0 %v487
    %v489 = vand.u32 %v28, 4294901760
    %v490 = vsub.f32 %v28, %v489
    %v491 = vand.u32 %v490, 4294901760
    %v492 = vsub.f32 %v490, %v491
    %v493 = vand.u32 %v492, 4294901760
    %494 = vmatpush.msra.mxu0 %v493
    %v495 = vand.u32 %v27, 4294901760
    %v496 = vsub.f32 %v27, %v495
    %v497 = vand.u32 %v496, 4294901760
    %v498 = vsub.f32 %v496, %v497
    %v499 = vand.u32 %v498, 4294901760
    %500 = vmatpush.msra.mxu0 %v499
    %v501 = vand.u32 %v26, 4294901760
    %v502 = vsub.f32 %v26, %v501
    %v503 = vand.u32 %v502, 4294901760
    %v504 = vsub.f32 %v502, %v503
    %v505 = vand.u32 %v504, 4294901760
    %506 = vmatpush.msra.mxu0 %v505
    %v507 = vand.u32 %v25, 4294901760
    %v508 = vsub.f32 %v25, %v507
    %v509 = vand.u32 %v508, 4294901760
    %v510 = vsub.f32 %v508, %v509
    %v511 = vand.u32 %v510, 4294901760
    %512 = vmatpush.msra.mxu0 %v511
    %v513 = vand.u32 %v24, 4294901760
    %v514 = vsub.f32 %v24, %v513
    %v515 = vand.u32 %v514, 4294901760
    %v516 = vsub.f32 %v514, %v515
    %v517 = vand.u32 %v516, 4294901760
    %518 = vmatpush.msra.mxu0 %v517
    %v519 = vand.u32 %v23, 4294901760
    %v520 = vsub.f32 %v23, %v519
    %v521 = vand.u32 %v520, 4294901760
    %v522 = vsub.f32 %v520, %v521
    %v523 = vand.u32 %v522, 4294901760
    %524 = vmatpush.msra.mxu0 %v523
    %v525 = vand.u32 %v22, 4294901760
    %v526 = vsub.f32 %v22, %v525
    %v527 = vand.u32 %v526, 4294901760
    %v528 = vsub.f32 %v526, %v527
    %v529 = vand.u32 %v528, 4294901760
    %530 = vmatpush.msra.mxu0 %v529
    %v531 = vand.u32 %v21, 4294901760
    %v532 = vsub.f32 %v21, %v531
    %v533 = vand.u32 %v532, 4294901760
    %v534 = vsub.f32 %v532, %v533
    %v535 = vand.u32 %v534, 4294901760
    %536 = vmatpush.msra.mxu0 %v535
    %v537 = vand.u32 %v397, 4294901760
    %538 = vmatmul.f32.gmra.mxu0 %v537
    %v539 = vpop.f32.mrf.mxu0
    %v540 = vadd.f32 %v439, %v539
    %541 = vdwg.mxu0
    %v542 = vand.u32 %v36, 4294901760
    %v543 = vsub.f32 %v36, %v542
    %544 = vmatpush.msra.mxu0 %v543
    %v545 = vand.u32 %v35, 4294901760
    %v546 = vsub.f32 %v35, %v545
    %547 = vmatpush.msra.mxu0 %v546
    %v548 = vand.u32 %v34, 4294901760
    %v549 = vsub.f32 %v34, %v548
    %550 = vmatpush.msra.mxu0 %v549
    %v551 = vand.u32 %v33, 4294901760
    %v552 = vsub.f32 %v33, %v551
    %553 = vmatpush.msra.mxu0 %v552
    %v554 = vand.u32 %v32, 4294901760
    %v555 = vsub.f32 %v32, %v554
    %556 = vmatpush.msra.mxu0 %v555
    %v557 = vand.u32 %v31, 4294901760
    %v558 = vsub.f32 %v31, %v557
    %559 = vmatpush.msra.mxu0 %v558
    %v560 = vand.u32 %v30, 4294901760
    %v561 = vsub.f32 %v30, %v560
    %562 = vmatpush.msra.mxu0 %v561
    %v563 = vand.u32 %v29, 4294901760
    %v564 = vsub.f32 %v29, %v563
    %565 = vmatpush.msra.mxu0 %v564
    %v566 = vand.u32 %v28, 4294901760
    %v567 = vsub.f32 %v28, %v566
    %568 = vmatpush.msra.mxu0 %v567
    %v569 = vand.u32 %v27, 4294901760
    %v570 = vsub.f32 %v27, %v569
    %571 = vmatpush.msra.mxu0 %v570
    %v572 = vand.u32 %v26, 4294901760
    %v573 = vsub.f32 %v26, %v572
    %574 = vmatpush.msra.mxu0 %v573
    %v575 = vand.u32 %v25, 4294901760
    %v576 = vsub.f32 %v25, %v575
    %577 = vmatpush.msra.mxu0 %v576
    %v578 = vand.u32 %v24, 4294901760
    %v579 = vsub.f32 %v24, %v578
    %580 = vmatpush.msra.mxu0 %v579
    %v581 = vand.u32 %v23, 4294901760
    %v582 = vsub.f32 %v23, %v581
    %583 = vmatpush.msra.mxu0 %v582
    %v584 = vand.u32 %v22, 4294901760
    %v585 = vsub.f32 %v22, %v584
    %586 = vmatpush.msra.mxu0 %v585
    %v587 = vand.u32 %v21, 4294901760
    %v588 = vsub.f32 %v21, %v587
    %589 = vmatpush.msra.mxu0 %v588
    %v590 = vand.u32 %v397, 4294901760
    %v591 = vsub.f32 %v397, %v590
    %592 = vmatmul.f32.gmra.mxu0 %v591
    %v593 = vpop.f32.mrf.mxu0
    %v594 = vadd.f32 %v540, %v593
    %595 = vdwg.mxu0
    %v596 = vand.u32 %v36, 4294901760
    %597 = vmatpush.msra.mxu0 %v596
    %v598 = vand.u32 %v35, 4294901760
    %599 = vmatpush.msra.mxu0 %v598
    %v600 = vand.u32 %v34, 4294901760
    %601 = vmatpush.msra.mxu0 %v600
    %v602 = vand.u32 %v33, 4294901760
    %603 = vmatpush.msra.mxu0 %v602
    %v604 = vand.u32 %v32, 4294901760
    %605 = vmatpush.msra.mxu0 %v604
    %v606 = vand.u32 %v31, 4294901760
    %607 = vmatpush.msra.mxu0 %v606
    %v608 = vand.u32 %v30, 4294901760
    %609 = vmatpush.msra.mxu0 %v608
    %v610 = vand.u32 %v29, 4294901760
    %611 = vmatpush.msra.mxu0 %v610
    %v612 = vand.u32 %v28, 4294901760
    %613 = vmatpush.msra.mxu0 %v612
    %v614 = vand.u32 %v27, 4294901760
    %615 = vmatpush.msra.mxu0 %v614
    %v616 = vand.u32 %v26, 4294901760
    %617 = vmatpush.msra.mxu0 %v616
    %v618 = vand.u32 %v25, 4294901760
    %619 = vmatpush.msra.mxu0 %v618
    %v620 = vand.u32 %v24, 4294901760
    %621 = vmatpush.msra.mxu0 %v620
    %v622 = vand.u32 %v23, 4294901760
    %623 = vmatpush.msra.mxu0 %v622
    %v624 = vand.u32 %v22, 4294901760
    %625 = vmatpush.msra.mxu0 %v624
    %v626 = vand.u32 %v21, 4294901760
    %627 = vmatpush.msra.mxu0 %v626
    %v628 = vand.u32 %v397, 4294901760
    %v629 = vsub.f32 %v397, %v628
    %v630 = vand.u32 %v629, 4294901760
    %631 = vmatmul.f32.gmra.mxu0 %v630
    %v632 = vpop.f32.mrf.mxu0
    %v633 = vadd.f32 %v594, %v632
    %634 = vdwg.mxu0
    %v635 = vand.u32 %v36, 4294901760
    %v636 = vsub.f32 %v36, %v635
    %v637 = vand.u32 %v636, 4294901760
    %638 = vmatpush.msra.mxu0 %v637
    %v639 = vand.u32 %v35, 4294901760
    %v640 = vsub.f32 %v35, %v639
    %v641 = vand.u32 %v640, 4294901760
    %642 = vmatpush.msra.mxu0 %v641
    %v643 = vand.u32 %v34, 4294901760
    %v644 = vsub.f32 %v34, %v643
    %v645 = vand.u32 %v644, 4294901760
    %646 = vmatpush.msra.mxu0 %v645
    %v647 = vand.u32 %v33, 4294901760
    %v648 = vsub.f32 %v33, %v647
    %v649 = vand.u32 %v648, 4294901760
    %650 = vmatpush.msra.mxu0 %v649
    %v651 = vand.u32 %v32, 4294901760
    %v652 = vsub.f32 %v32, %v651
    %v653 = vand.u32 %v652, 4294901760
    %654 = vmatpush.msra.mxu0 %v653
    %v655 = vand.u32 %v31, 4294901760
    %v656 = vsub.f32 %v31, %v655
    %v657 = vand.u32 %v656, 4294901760
    %658 = vmatpush.msra.mxu0 %v657
    %v659 = vand.u32 %v30, 4294901760
    %v660 = vsub.f32 %v30, %v659
    %v661 = vand.u32 %v660, 4294901760
    %662 = vmatpush.msra.mxu0 %v661
    %v663 = vand.u32 %v29, 4294901760
    %v664 = vsub.f32 %v29, %v663
    %v665 = vand.u32 %v664, 4294901760
    %666 = vmatpush.msra.mxu0 %v665
    %v667 = vand.u32 %v28, 4294901760
    %v668 = vsub.f32 %v28, %v667
    %v669 = vand.u32 %v668, 4294901760
    %670 = vmatpush.msra.mxu0 %v669
    %v671 = vand.u32 %v27, 4294901760
    %v672 = vsub.f32 %v27, %v671
    %v673 = vand.u32 %v672, 4294901760
    %674 = vmatpush.msra.mxu0 %v673
    %v675 = vand.u32 %v26, 4294901760
    %v676 = vsub.f32 %v26, %v675
    %v677 = vand.u32 %v676, 4294901760
    %678 = vmatpush.msra.mxu0 %v677
    %v679 = vand.u32 %v25, 4294901760
    %v680 = vsub.f32 %v25, %v679
    %v681 = vand.u32 %v680, 4294901760
    %682 = vmatpush.msra.mxu0 %v681
    %v683 = vand.u32 %v24, 4294901760
    %v684 = vsub.f32 %v24, %v683
    %v685 = vand.u32 %v684, 4294901760
    %686 = vmatpush.msra.mxu0 %v685
    %v687 = vand.u32 %v23, 4294901760
    %v688 = vsub.f32 %v23, %v687
    %v689 = vand.u32 %v688, 4294901760
    %690 = vmatpush.msra.mxu0 %v689
    %v691 = vand.u32 %v22, 4294901760
    %v692 = vsub.f32 %v22, %v691
    %v693 = vand.u32 %v692, 4294901760
    %694 = vmatpush.msra.mxu0 %v693
    %v695 = vand.u32 %v21, 4294901760
    %v696 = vsub.f32 %v21, %v695
    %v697 = vand.u32 %v696, 4294901760
    %698 = vmatpush.msra.mxu0 %v697
    %v699 = vand.u32 %v397, 4294901760
    %700 = vmatmul.f32.gmra.mxu0 %v699
    %v701 = vpop.f32.mrf.mxu0
    %v702 = vadd.f32 %v633, %v701
    %703 = vdwg.mxu0
    %v704 = vand.u32 %v36, 4294901760
    %705 = vmatpush.msra.mxu0 %v704
    %v706 = vand.u32 %v35, 4294901760
    %707 = vmatpush.msra.mxu0 %v706
    %v708 = vand.u32 %v34, 4294901760
    %709 = vmatpush.msra.mxu0 %v708
    %v710 = vand.u32 %v33, 4294901760
    %711 = vmatpush.msra.mxu0 %v710
    %v712 = vand.u32 %v32, 4294901760
    %713 = vmatpush.msra.mxu0 %v712
    %v714 = vand.u32 %v31, 4294901760
    %715 = vmatpush.msra.mxu0 %v714
    %v716 = vand.u32 %v30, 4294901760
    %717 = vmatpush.msra.mxu0 %v716
    %v718 = vand.u32 %v29, 4294901760
    %719 = vmatpush.msra.mxu0 %v718
    %v720 = vand.u32 %v28, 4294901760
    %721 = vmatpush.msra.mxu0 %v720
    %v722 = vand.u32 %v27, 4294901760
    %723 = vmatpush.msra.mxu0 %v722
    %v724 = vand.u32 %v26, 4294901760
    %725 = vmatpush.msra.mxu0 %v724
    %v726 = vand.u32 %v25, 4294901760
    %727 = vmatpush.msra.mxu0 %v726
    %v728 = vand.u32 %v24, 4294901760
    %729 = vmatpush.msra.mxu0 %v728
    %v730 = vand.u32 %v23, 4294901760
    %731 = vmatpush.msra.mxu0 %v730
    %v732 = vand.u32 %v22, 4294901760
    %733 = vmatpush.msra.mxu0 %v732
    %v734 = vand.u32 %v21, 4294901760
    %735 = vmatpush.msra.mxu0 %v734
    %v736 = vand.u32 %v397, 4294901760
    %737 = vmatmul.f32.gmra.mxu0 %v736
    %v738 = vpop.f32.mrf.mxu0
    %v739 = vadd.f32 %v702, %v738
    %740 = vdwg.mxu0
    %v741 = vadd.f32 %v399, %v739
    %v742 = vtanh.pop %v741
    %s743 = scalar_lea.vmem %s0, 16
    %v744 = vld [vmem:[%s743] sm:$0xff]
    %v745 = vand.u32 %v36, 4294901760
    %746 = vmatpush.msra.mxu0 %v745
    %v747 = vand.u32 %v35, 4294901760
    %748 = vmatpush.msra.mxu0 %v747
    %v749 = vand.u32 %v34, 4294901760
    %750 = vmatpush.msra.mxu0 %v749
    %v751 = vand.u32 %v33, 4294901760
    %752 = vmatpush.msra.mxu0 %v751
    %v753 = vand.u32 %v32, 4294901760
    %754 = vmatpush.msra.mxu0 %v753
    %v755 = vand.u32 %v31, 4294901760
    %756 = vmatpush.msra.mxu0 %v755
    %v757 = vand.u32 %v30, 4294901760
    %758 = vmatpush.msra.mxu0 %v757
    %v759 = vand.u32 %v29, 4294901760
    %760 = vmatpush.msra.mxu0 %v759
    %v761 = vand.u32 %v28, 4294901760
    %762 = vmatpush.msra.mxu0 %v761
    %v763 = vand.u32 %v27, 4294901760
    %764 = vmatpush.msra.mxu0 %v763
    %v765 = vand.u32 %v26, 4294901760
    %766 = vmatpush.msra.mxu0 %v765
    %v767 = vand.u32 %v25, 4294901760
    %768 = vmatpush.msra.mxu0 %v767
    %v769 = vand.u32 %v24, 4294901760
    %770 = vmatpush.msra.mxu0 %v769
    %v771 = vand.u32 %v23, 4294901760
    %772 = vmatpush.msra.mxu0 %v771
    %v773 = vand.u32 %v22, 4294901760
    %774 = vmatpush.msra.mxu0 %v773
    %v775 = vand.u32 %v21, 4294901760
    %776 = vmatpush.msra.mxu0 %v775
    %v777 = vand.u32 %v742, 4294901760
    %v778 = vsub.f32 %v742, %v777
    %v779 = vand.u32 %v778, 4294901760
    %v780 = vsub.f32 %v778, %v779
    %v781 = vand.u32 %v780, 4294901760
    %782 = vmatmul.f32.gmra.mxu0 %v781
    %v783 = vpop.f32.mrf.mxu0
    %v784 = vadd.f32 0.0, %v783
    %785 = vdwg.mxu0
    %v786 = vand.u32 %v36, 4294901760
    %v787 = vsub.f32 %v36, %v786
    %v788 = vand.u32 %v787, 4294901760
    %v789 = vsub.f32 %v787, %v788
    %v790 = vand.u32 %v789, 4294901760
    %791 = vmatpush.msra.mxu0 %v790
    %v792 = vand.u32 %v35, 4294901760
    %v793 = vsub.f32 %v35, %v792
    %v794 = vand.u32 %v793, 4294901760
    %v795 = vsub.f32 %v793, %v794
    %v796 = vand.u32 %v795, 4294901760
    %797 = vmatpush.msra.mxu0 %v796
    %v798 = vand.u32 %v34, 4294901760
    %v799 = vsub.f32 %v34, %v798
    %v800 = vand.u32 %v799, 4294901760
    %v801 = vsub.f32 %v799, %v800
    %v802 = vand.u32 %v801, 4294901760
    %803 = vmatpush.msra.mxu0 %v802
    %v804 = vand.u32 %v33, 4294901760
    %v805 = vsub.f32 %v33, %v804
    %v806 = vand.u32 %v805, 4294901760
    %v807 = vsub.f32 %v805, %v806
    %v808 = vand.u32 %v807, 4294901760
    %809 = vmatpush.msra.mxu0 %v808
    %v810 = vand.u32 %v32, 4294901760
    %v811 = vsub.f32 %v32, %v810
    %v812 = vand.u32 %v811, 4294901760
    %v813 = vsub.f32 %v811, %v812
    %v814 = vand.u32 %v813, 4294901760
    %815 = vmatpush.msra.mxu0 %v814
    %v816 = vand.u32 %v31, 4294901760
    %v817 = vsub.f32 %v31, %v816
    %v818 = vand.u32 %v817, 4294901760
    %v819 = vsub.f32 %v817, %v818
    %v820 = vand.u32 %v819, 4294901760
    %821 = vmatpush.msra.mxu0 %v820
    %v822 = vand.u32 %v30, 4294901760
    %v823 = vsub.f32 %v30, %v822
    %v824 = vand.u32 %v823, 4294901760
    %v825 = vsub.f32 %v823, %v824
    %v826 = vand.u32 %v825, 4294901760
    %827 = vmatpush.msra.mxu0 %v826
    %v828 = vand.u32 %v29, 4294901760
    %v829 = vsub.f32 %v29, %v828
    %v830 = vand.u32 %v829, 4294901760
    %v831 = vsub.f32 %v829, %v830
    %v832 = vand.u32 %v831, 4294901760
    %833 = vmatpush.msra.mxu0 %v832
    %v834 = vand.u32 %v28, 4294901760
    %v835 = vsub.f32 %v28, %v834
    %v836 = vand.u32 %v835, 4294901760
    %v837 = vsub.f32 %v835, %v836
    %v838 = vand.u32 %v837, 4294901760
    %839 = vmatpush.msra.mxu0 %v838
    %v840 = vand.u32 %v27, 4294901760
    %v841 = vsub.f32 %v27, %v840
    %v842 = vand.u32 %v841, 4294901760
    %v843 = vsub.f32 %v841, %v842
    %v844 = vand.u32 %v843, 4294901760
    %845 = vmatpush.msra.mxu0 %v844
    %v846 = vand.u32 %v26, 4294901760
    %v847 = vsub.f32 %v26, %v846
    %v848 = vand.u32 %v847, 4294901760
    %v849 = vsub.f32 %v847, %v848
    %v850 = vand.u32 %v849, 4294901760
    %851 = vmatpush.msra.mxu0 %v850
    %v852 = vand.u32 %v25, 4294901760
    %v853 = vsub.f32 %v25, %v852
    %v854 = vand.u32 %v853, 4294901760
    %v855 = vsub.f32 %v853, %v854
    %v856 = vand.u32 %v855, 4294901760
    %857 = vmatpush.msra.mxu0 %v856
    %v858 = vand.u32 %v24, 4294901760
    %v859 = vsub.f32 %v24, %v858
    %v860 = vand.u32 %v859, 4294901760
    %v861 = vsub.f32 %v859, %v860
    %v862 = vand.u32 %v861, 4294901760
    %863 = vmatpush.msra.mxu0 %v862
    %v864 = vand.u32 %v23, 4294901760
    %v865 = vsub.f32 %v23, %v864
    %v866 = vand.u32 %v865, 4294901760
    %v867 = vsub.f32 %v865, %v866
    %v868 = vand.u32 %v867, 4294901760
    %869 = vmatpush.msra.mxu0 %v868
    %v870 = vand.u32 %v22, 4294901760
    %v871 = vsub.f32 %v22, %v870
    %v872 = vand.u32 %v871, 4294901760
    %v873 = vsub.f32 %v871, %v872
    %v874 = vand.u32 %v873, 4294901760
    %875 = vmatpush.msra.mxu0 %v874
    %v876 = vand.u32 %v21, 4294901760
    %v877 = vsub.f32 %v21, %v876
    %v878 = vand.u32 %v877, 4294901760
    %v879 = vsub.f32 %v877, %v878
    %v880 = vand.u32 %v879, 4294901760
    %881 = vmatpush.msra.mxu0 %v880
    %v882 = vand.u32 %v742, 4294901760
    %883 = vmatmul.f32.gmra.mxu0 %v882
    %v884 = vpop.f32.mrf.mxu0
    %v885 = vadd.f32 %v784, %v884
    %886 = vdwg.mxu0
    %v887 = vand.u32 %v36, 4294901760
    %v888 = vsub.f32 %v36, %v887
    %889 = vmatpush.msra.mxu0 %v888
    %v890 = vand.u32 %v35, 4294901760
    %v891 = vsub.f32 %v35, %v890
    %892 = vmatpush.msra.mxu0 %v891
    %v893 = vand.u32 %v34, 4294901760
    %v894 = vsub.f32 %v34, %v893
    %895 = vmatpush.msra.mxu0 %v894
    %v896 = vand.u32 %v33, 4294901760
    %v897 = vsub.f32 %v33, %v896
    %898 = vmatpush.msra.mxu0 %v897
    %v899 = vand.u32 %v32, 4294901760
    %v900 = vsub.f32 %v32, %v899
    %901 = vmatpush.msra.mxu0 %v900
    %v902 = vand.u32 %v31, 4294901760
    %v903 = vsub.f32 %v31, %v902
    %904 = vmatpush.msra.mxu0 %v903
    %v905 = vand.u32 %v30, 4294901760
    %v906 = vsub.f32 %v30, %v905
    %907 = vmatpush.msra.mxu0 %v906
    %v908 = vand.u32 %v29, 4294901760
    %v909 = vsub.f32 %v29, %v908
    %910 = vmatpush.msra.mxu0 %v909
    %v911 = vand.u32 %v28, 4294901760
    %v912 = vsub.f32 %v28, %v911
    %913 = vmatpush.msra.mxu0 %v912
    %v914 = vand.u32 %v27, 4294901760
    %v915 = vsub.f32 %v27, %v914
    %916 = vmatpush.msra.mxu0 %v915
    %v917 = vand.u32 %v26, 4294901760
    %v918 = vsub.f32 %v26, %v917
    %919 = vmatpush.msra.mxu0 %v918
    %v920 = vand.u32 %v25, 4294901760
    %v921 = vsub.f32 %v25, %v920
    %922 = vmatpush.msra.mxu0 %v921
    %v923 = vand.u32 %v24, 4294901760
    %v924 = vsub.f32 %v24, %v923
    %925 = vmatpush.msra.mxu0 %v924
    %v926 = vand.u32 %v23, 4294901760
    %v927 = vsub.f32 %v23, %v926
    %928 = vmatpush.msra.mxu0 %v927
    %v929 = vand.u32 %v22, 4294901760
    %v930 = vsub.f32 %v22, %v929
    %931 = vmatpush.msra.mxu0 %v930
    %v932 = vand.u32 %v21, 4294901760
    %v933 = vsub.f32 %v21, %v932
    %934 = vmatpush.msra.mxu0 %v933
    %v935 = vand.u32 %v742, 4294901760
    %v936 = vsub.f32 %v742, %v935
    %937 = vmatmul.f32.gmra.mxu0 %v936
    %v938 = vpop.f32.mrf.mxu0
    %v939 = vadd.f32 %v885, %v938
    %940 = vdwg.mxu0
    %v941 = vand.u32 %v36, 4294901760
    %942 = vmatpush.msra.mxu0 %v941
    %v943 = vand.u32 %v35, 4294901760
    %944 = vmatpush.msra.mxu0 %v943
    %v945 = vand.u32 %v34, 4294901760
    %946 = vmatpush.msra.mxu0 %v945
    %v947 = vand.u32 %v33, 4294901760
    %948 = vmatpush.msra.mxu0 %v947
    %v949 = vand.u32 %v32, 4294901760
    %950 = vmatpush.msra.mxu0 %v949
    %v951 = vand.u32 %v31, 4294901760
    %952 = vmatpush.msra.mxu0 %v951
    %v953 = vand.u32 %v30, 4294901760
    %954 = vmatpush.msra.mxu0 %v953
    %v955 = vand.u32 %v29, 4294901760
    %956 = vmatpush.msra.mxu0 %v955
    %v957 = vand.u32 %v28, 4294901760
    %958 = vmatpush.msra.mxu0 %v957
    %v959 = vand.u32 %v27, 4294901760
    %960 = vmatpush.msra.mxu0 %v959
    %v961 = vand.u32 %v26, 4294901760
    %962 = vmatpush.msra.mxu0 %v961
    %v963 = vand.u32 %v25, 4294901760
    %964 = vmatpush.msra.mxu0 %v963
    %v965 = vand.u32 %v24, 4294901760
    %966 = vmatpush.msra.mxu0 %v965
    %v967 = vand.u32 %v23, 4294901760
    %968 = vmatpush.msra.mxu0 %v967
    %v969 = vand.u32 %v22, 4294901760
    %970 = vmatpush.msra.mxu0 %v969
    %v971 = vand.u32 %v21, 4294901760
    %972 = vmatpush.msra.mxu0 %v971
    %v973 = vand.u32 %v742, 4294901760
    %v974 = vsub.f32 %v742, %v973
    %v975 = vand.u32 %v974, 4294901760
    %976 = vmatmul.f32.gmra.mxu0 %v975
    %v977 = vpop.f32.mrf.mxu0
    %v978 = vadd.f32 %v939, %v977
    %979 = vdwg.mxu0
    %v980 = vand.u32 %v36, 4294901760
    %v981 = vsub.f32 %v36, %v980
    %v982 = vand.u32 %v981, 4294901760
    %983 = vmatpush.msra.mxu0 %v982
    %v984 = vand.u32 %v35, 4294901760
    %v985 = vsub.f32 %v35, %v984
    %v986 = vand.u32 %v985, 4294901760
    %987 = vmatpush.msra.mxu0 %v986
    %v988 = vand.u32 %v34, 4294901760
    %v989 = vsub.f32 %v34, %v988
    %v990 = vand.u32 %v989, 4294901760
    %991 = vmatpush.msra.mxu0 %v990
    %v992 = vand.u32 %v33, 4294901760
    %v993 = vsub.f32 %v33, %v992
    %v994 = vand.u32 %v993, 4294901760
    %995 = vmatpush.msra.mxu0 %v994
    %v996 = vand.u32 %v32, 4294901760
    %v997 = vsub.f32 %v32, %v996
    %v998 = vand.u32 %v997, 4294901760
    %999 = vmatpush.msra.mxu0 %v998
    %v1000 = vand.u32 %v31, 4294901760
    %v1001 = vsub.f32 %v31, %v1000
    %v1002 = vand.u32 %v1001, 4294901760
    %1003 = vmatpush.msra.mxu0 %v1002
    %v1004 = vand.u32 %v30, 4294901760
    %v1005 = vsub.f32 %v30, %v1004
    %v1006 = vand.u32 %v1005, 4294901760
    %1007 = vmatpush.msra.mxu0 %v1006
    %v1008 = vand.u32 %v29, 4294901760
    %v1009 = vsub.f32 %v29, %v1008
    %v1010 = vand.u32 %v1009, 4294901760
    %1011 = vmatpush.msra.mxu0 %v1010
    %v1012 = vand.u32 %v28, 4294901760
    %v1013 = vsub.f32 %v28, %v1012
    %v1014 = vand.u32 %v1013, 4294901760
    %1015 = vmatpush.msra.mxu0 %v1014
    %v1016 = vand.u32 %v27, 4294901760
    %v1017 = vsub.f32 %v27, %v1016
    %v1018 = vand.u32 %v1017, 4294901760
    %1019 = vmatpush.msra.mxu0 %v1018
    %v1020 = vand.u32 %v26, 4294901760
    %v1021 = vsub.f32 %v26, %v1020
    %v1022 = vand.u32 %v1021, 4294901760
    %1023 = vmatpush.msra.mxu0 %v1022
    %v1024 = vand.u32 %v25, 4294901760
    %v1025 = vsub.f32 %v25, %v1024
    %v1026 = vand.u32 %v1025, 4294901760
    %1027 = vmatpush.msra.mxu0 %v1026
    %v1028 = vand.u32 %v24, 4294901760
    %v1029 = vsub.f32 %v24, %v1028
    %v1030 = vand.u32 %v1029, 4294901760
    %1031 = vmatpush.msra.mxu0 %v1030
    %v1032 = vand.u32 %v23, 4294901760
    %v1033 = vsub.f32 %v23, %v1032
    %v1034 = vand.u32 %v1033, 4294901760
    %1035 = vmatpush.msra.mxu0 %v1034
    %v1036 = vand.u32 %v22, 4294901760
    %v1037 = vsub.f32 %v22, %v1036
    %v1038 = vand.u32 %v1037, 4294901760
    %1039 = vmatpush.msra.mxu0 %v1038
    %v1040 = vand.u32 %v21, 4294901760
    %v1041 = vsub.f32 %v21, %v1040
    %v1042 = vand.u32 %v1041, 4294901760
    %1043 = vmatpush.msra.mxu0 %v1042
    %v1044 = vand.u32 %v742, 4294901760
    %1045 = vmatmul.f32.gmra.mxu0 %v1044
    %v1046 = vpop.f32.mrf.mxu0
    %v1047 = vadd.f32 %v978, %v1046
    %1048 = vdwg.mxu0
    %v1049 = vand.u32 %v36, 4294901760
    %1050 = vmatpush.msra.mxu0 %v1049
    %v1051 = vand.u32 %v35, 4294901760
    %1052 = vmatpush.msra.mxu0 %v1051
    %v1053 = vand.u32 %v34, 4294901760
    %1054 = vmatpush.msra.mxu0 %v1053
    %v1055 = vand.u32 %v33, 4294901760
    %1056 = vmatpush.msra.mxu0 %v1055
    %v1057 = vand.u32 %v32, 4294901760
    %1058 = vmatpush.msra.mxu0 %v1057
    %v1059 = vand.u32 %v31, 4294901760
    %1060 = vmatpush.msra.mxu0 %v1059
    %v1061 = vand.u32 %v30, 4294901760
    %1062 = vmatpush.msra.mxu0 %v1061
    %v1063 = vand.u32 %v29, 4294901760
    %1064 = vmatpush.msra.mxu0 %v1063
    %v1065 = vand.u32 %v28, 4294901760
    %1066 = vmatpush.msra.mxu0 %v1065
    %v1067 = vand.u32 %v27, 4294901760
    %1068 = vmatpush.msra.mxu0 %v1067
    %v1069 = vand.u32 %v26, 4294901760
    %1070 = vmatpush.msra.mxu0 %v1069
    %v1071 = vand.u32 %v25, 4294901760
    %1072 = vmatpush.msra.mxu0 %v1071
    %v1073 = vand.u32 %v24, 4294901760
    %1074 = vmatpush.msra.mxu0 %v1073
    %v1075 = vand.u32 %v23, 4294901760
    %1076 = vmatpush.msra.mxu0 %v1075
    %v1077 = vand.u32 %v22, 4294901760
    %1078 = vmatpush.msra.mxu0 %v1077
    %v1079 = vand.u32 %v21, 4294901760
    %1080 = vmatpush.msra.mxu0 %v1079
    %v1081 = vand.u32 %v742, 4294901760
    %1082 = vmatmul.f32.gmra.mxu0 %v1081
    %v1083 = vpop.f32.mrf.mxu0
    %v1084 = vadd.f32 %v1047, %v1083
    %1085 = vdwg.mxu0
    %v1086 = vadd.f32 %v744, %v1084
    %v1087 = vtanh.pop %v1086
    %s1088 = scalar_lea.vmem %s0, 24
    %v1089 = vld [vmem:[%s1088] sm:$0xff]
    %v1090 = vand.u32 %v36, 4294901760
    %1091 = vmatpush.msra.mxu0 %v1090
    %v1092 = vand.u32 %v35, 4294901760
    %1093 = vmatpush.msra.mxu0 %v1092
    %v1094 = vand.u32 %v34, 4294901760
    %1095 = vmatpush.msra.mxu0 %v1094
    %v1096 = vand.u32 %v33, 4294901760
    %1097 = vmatpush.msra.mxu0 %v1096
    %v1098 = vand.u32 %v32, 4294901760
    %1099 = vmatpush.msra.mxu0 %v1098
    %v1100 = vand.u32 %v31, 4294901760
    %1101 = vmatpush.msra.mxu0 %v1100
    %v1102 = vand.u32 %v30, 4294901760
    %1103 = vmatpush.msra.mxu0 %v1102
    %v1104 = vand.u32 %v29, 4294901760
    %1105 = vmatpush.msra.mxu0 %v1104
    %v1106 = vand.u32 %v28, 4294901760
    %1107 = vmatpush.msra.mxu0 %v1106
    %v1108 = vand.u32 %v27, 4294901760
    %1109 = vmatpush.msra.mxu0 %v1108
    %v1110 = vand.u32 %v26, 4294901760
    %1111 = vmatpush.msra.mxu0 %v1110
    %v1112 = vand.u32 %v25, 4294901760
    %1113 = vmatpush.msra.mxu0 %v1112
    %v1114 = vand.u32 %v24, 4294901760
    %1115 = vmatpush.msra.mxu0 %v1114
    %v1116 = vand.u32 %v23, 4294901760
    %1117 = vmatpush.msra.mxu0 %v1116
    %v1118 = vand.u32 %v22, 4294901760
    %1119 = vmatpush.msra.mxu0 %v1118
    %v1120 = vand.u32 %v21, 4294901760
    %1121 = vmatpush.msra.mxu0 %v1120
    %v1122 = vand.u32 %v1087, 4294901760
    %v1123 = vsub.f32 %v1087, %v1122
    %v1124 = vand.u32 %v1123, 4294901760
    %v1125 = vsub.f32 %v1123, %v1124
    %v1126 = vand.u32 %v1125, 4294901760
    %1127 = vmatmul.f32.gmra.mxu0 %v1126
    %v1128 = vpop.f32.mrf.mxu0
    %v1129 = vadd.f32 0.0, %v1128
    %1130 = vdwg.mxu0
    %v1131 = vand.u32 %v36, 4294901760
    %v1132 = vsub.f32 %v36, %v1131
    %v1133 = vand.u32 %v1132, 4294901760
    %v1134 = vsub.f32 %v1132, %v1133
    %v1135 = vand.u32 %v1134, 4294901760
    %1136 = vmatpush.msra.mxu0 %v1135
    %v1137 = vand.u32 %v35, 4294901760
    %v1138 = vsub.f32 %v35, %v1137
    %v1139 = vand.u32 %v1138, 4294901760
    %v1140 = vsub.f32 %v1138, %v1139
    %v1141 = vand.u32 %v1140, 4294901760
    %1142 = vmatpush.msra.mxu0 %v1141
    %v1143 = vand.u32 %v34, 4294901760
    %v1144 = vsub.f32 %v34, %v1143
    %v1145 = vand.u32 %v1144, 4294901760
    %v1146 = vsub.f32 %v1144, %v1145
    %v1147 = vand.u32 %v1146, 4294901760
    %1148 = vmatpush.msra.mxu0 %v1147
    %v1149 = vand.u32 %v33, 4294901760
    %v1150 = vsub.f32 %v33, %v1149
    %v1151 = vand.u32 %v1150, 4294901760
    %v1152 = vsub.f32 %v1150, %v1151
    %v1153 = vand.u32 %v1152, 4294901760
    %1154 = vmatpush.msra.mxu0 %v1153
    %v1155 = vand.u32 %v32, 4294901760
    %v1156 = vsub.f32 %v32, %v1155
    %v1157 = vand.u32 %v1156, 4294901760
    %v1158 = vsub.f32 %v1156, %v1157
    %v1159 = vand.u32 %v1158, 4294901760
    %1160 = vmatpush.msra.mxu0 %v1159
    %v1161 = vand.u32 %v31, 4294901760
    %v1162 = vsub.f32 %v31, %v1161
    %v1163 = vand.u32 %v1162, 4294901760
    %v1164 = vsub.f32 %v1162, %v1163
    %v1165 = vand.u32 %v1164, 4294901760
    %1166 = vmatpush.msra.mxu0 %v1165
    %v1167 = vand.u32 %v30, 4294901760
    %v1168 = vsub.f32 %v30, %v1167
    %v1169 = vand.u32 %v1168, 4294901760
    %v1170 = vsub.f32 %v1168, %v1169
    %v1171 = vand.u32 %v1170, 4294901760
    %1172 = vmatpush.msra.mxu0 %v1171
    %v1173 = vand.u32 %v29, 4294901760
    %v1174 = vsub.f32 %v29, %v1173
    %v1175 = vand.u32 %v1174, 4294901760
    %v1176 = vsub.f32 %v1174, %v1175
    %v1177 = vand.u32 %v1176, 4294901760
    %1178 = vmatpush.msra.mxu0 %v1177
    %v1179 = vand.u32 %v28, 4294901760
    %v1180 = vsub.f32 %v28, %v1179
    %v1181 = vand.u32 %v1180, 4294901760
    %v1182 = vsub.f32 %v1180, %v1181
    %v1183 = vand.u32 %v1182, 4294901760
    %1184 = vmatpush.msra.mxu0 %v1183
    %v1185 = vand.u32 %v27, 4294901760
    %v1186 = vsub.f32 %v27, %v1185
    %v1187 = vand.u32 %v1186, 4294901760
    %v1188 = vsub.f32 %v1186, %v1187
    %v1189 = vand.u32 %v1188, 4294901760
    %1190 = vmatpush.msra.mxu0 %v1189
    %v1191 = vand.u32 %v26, 4294901760
    %v1192 = vsub.f32 %v26, %v1191
    %v1193 = vand.u32 %v1192, 4294901760
    %v1194 = vsub.f32 %v1192, %v1193
    %v1195 = vand.u32 %v1194, 4294901760
    %1196 = vmatpush.msra.mxu0 %v1195
    %v1197 = vand.u32 %v25, 4294901760
    %v1198 = vsub.f32 %v25, %v1197
    %v1199 = vand.u32 %v1198, 4294901760
    %v1200 = vsub.f32 %v1198, %v1199
    %v1201 = vand.u32 %v1200, 4294901760
    %1202 = vmatpush.msra.mxu0 %v1201
    %v1203 = vand.u32 %v24, 4294901760
    %v1204 = vsub.f32 %v24, %v1203
    %v1205 = vand.u32 %v1204, 4294901760
    %v1206 = vsub.f32 %v1204, %v1205
    %v1207 = vand.u32 %v1206, 4294901760
    %1208 = vmatpush.msra.mxu0 %v1207
    %v1209 = vand.u32 %v23, 4294901760
    %v1210 = vsub.f32 %v23, %v1209
    %v1211 = vand.u32 %v1210, 4294901760
    %v1212 = vsub.f32 %v1210, %v1211
    %v1213 = vand.u32 %v1212, 4294901760
    %1214 = vmatpush.msra.mxu0 %v1213
    %v1215 = vand.u32 %v22, 4294901760
    %v1216 = vsub.f32 %v22, %v1215
    %v1217 = vand.u32 %v1216, 4294901760
    %v1218 = vsub.f32 %v1216, %v1217
    %v1219 = vand.u32 %v1218, 4294901760
    %1220 = vmatpush.msra.mxu0 %v1219
    %v1221 = vand.u32 %v21, 4294901760
    %v1222 = vsub.f32 %v21, %v1221
    %v1223 = vand.u32 %v1222, 4294901760
    %v1224 = vsub.f32 %v1222, %v1223
    %v1225 = vand.u32 %v1224, 4294901760
    %1226 = vmatpush.msra.mxu0 %v1225
    %v1227 = vand.u32 %v1087, 4294901760
    %1228 = vmatmul.f32.gmra.mxu0 %v1227
    %v1229 = vpop.f32.mrf.mxu0
    %v1230 = vadd.f32 %v1129, %v1229
    %1231 = vdwg.mxu0
    %v1232 = vand.u32 %v36, 4294901760
    %v1233 = vsub.f32 %v36, %v1232
    %1234 = vmatpush.msra.mxu0 %v1233
    %v1235 = vand.u32 %v35, 4294901760
    %v1236 = vsub.f32 %v35, %v1235
    %1237 = vmatpush.msra.mxu0 %v1236
    %v1238 = vand.u32 %v34, 4294901760
    %v1239 = vsub.f32 %v34, %v1238
    %1240 = vmatpush.msra.mxu0 %v1239
    %v1241 = vand.u32 %v33, 4294901760
    %v1242 = vsub.f32 %v33, %v1241
    %1243 = vmatpush.msra.mxu0 %v1242
    %v1244 = vand.u32 %v32, 4294901760
    %v1245 = vsub.f32 %v32, %v1244
    %1246 = vmatpush.msra.mxu0 %v1245
    %v1247 = vand.u32 %v31, 4294901760
    %v1248 = vsub.f32 %v31, %v1247
    %1249 = vmatpush.msra.mxu0 %v1248
    %v1250 = vand.u32 %v30, 4294901760
    %v1251 = vsub.f32 %v30, %v1250
    %1252 = vmatpush.msra.mxu0 %v1251
    %v1253 = vand.u32 %v29, 4294901760
    %v1254 = vsub.f32 %v29, %v1253
    %1255 = vmatpush.msra.mxu0 %v1254
    %v1256 = vand.u32 %v28, 4294901760
    %v1257 = vsub.f32 %v28, %v1256
    %1258 = vmatpush.msra.mxu0 %v1257
    %v1259 = vand.u32 %v27, 4294901760
    %v1260 = vsub.f32 %v27, %v1259
    %1261 = vmatpush.msra.mxu0 %v1260
    %v1262 = vand.u32 %v26, 4294901760
    %v1263 = vsub.f32 %v26, %v1262
    %1264 = vmatpush.msra.mxu0 %v1263
    %v1265 = vand.u32 %v25, 4294901760
    %v1266 = vsub.f32 %v25, %v1265
    %1267 = vmatpush.msra.mxu0 %v1266
    %v1268 = vand.u32 %v24, 4294901760
    %v1269 = vsub.f32 %v24, %v1268
    %1270 = vmatpush.msra.mxu0 %v1269
    %v1271 = vand.u32 %v23, 4294901760
    %v1272 = vsub.f32 %v23, %v1271
    %1273 = vmatpush.msra.mxu0 %v1272
    %v1274 = vand.u32 %v22, 4294901760
    %v1275 = vsub.f32 %v22, %v1274
    %1276 = vmatpush.msra.mxu0 %v1275
    %v1277 = vand.u32 %v21, 4294901760
    %v1278 = vsub.f32 %v21, %v1277
    %1279 = vmatpush.msra.mxu0 %v1278
    %v1280 = vand.u32 %v1087, 4294901760
    %v1281 = vsub.f32 %v1087, %v1280
    %1282 = vmatmul.f32.gmra.mxu0 %v1281
    %v1283 = vpop.f32.mrf.mxu0
    %v1284 = vadd.f32 %v1230, %v1283
    %1285 = vdwg.mxu0
    %v1286 = vand.u32 %v36, 4294901760
    %1287 = vmatpush.msra.mxu0 %v1286
    %v1288 = vand.u32 %v35, 4294901760
    %1289 = vmatpush.msra.mxu0 %v1288
    %v1290 = vand.u32 %v34, 4294901760
    %1291 = vmatpush.msra.mxu0 %v1290
    %v1292 = vand.u32 %v33, 4294901760
    %1293 = vmatpush.msra.mxu0 %v1292
    %v1294 = vand.u32 %v32, 4294901760
    %1295 = vmatpush.msra.mxu0 %v1294
    %v1296 = vand.u32 %v31, 4294901760
    %1297 = vmatpush.msra.mxu0 %v1296
    %v1298 = vand.u32 %v30, 4294901760
    %1299 = vmatpush.msra.mxu0 %v1298
    %v1300 = vand.u32 %v29, 4294901760
    %1301 = vmatpush.msra.mxu0 %v1300
    %v1302 = vand.u32 %v28, 4294901760
    %1303 = vmatpush.msra.mxu0 %v1302
    %v1304 = vand.u32 %v27, 4294901760
    %1305 = vmatpush.msra.mxu0 %v1304
    %v1306 = vand.u32 %v26, 4294901760
    %1307 = vmatpush.msra.mxu0 %v1306
    %v1308 = vand.u32 %v25, 4294901760
    %1309 = vmatpush.msra.mxu0 %v1308
    %v1310 = vand.u32 %v24, 4294901760
    %1311 = vmatpush.msra.mxu0 %v1310
    %v1312 = vand.u32 %v23, 4294901760
    %1313 = vmatpush.msra.mxu0 %v1312
    %v1314 = vand.u32 %v22, 4294901760
    %1315 = vmatpush.msra.mxu0 %v1314
    %v1316 = vand.u32 %v21, 4294901760
    %1317 = vmatpush.msra.mxu0 %v1316
    %v1318 = vand.u32 %v1087, 4294901760
    %v1319 = vsub.f32 %v1087, %v1318
    %v1320 = vand.u32 %v1319, 4294901760
    %1321 = vmatmul.f32.gmra.mxu0 %v1320
    %v1322 = vpop.f32.mrf.mxu0
    %v1323 = vadd.f32 %v1284, %v1322
    %1324 = vdwg.mxu0
    %v1325 = vand.u32 %v36, 4294901760
    %v1326 = vsub.f32 %v36, %v1325
    %v1327 = vand.u32 %v1326, 4294901760
    %1328 = vmatpush.msra.mxu0 %v1327
    %v1329 = vand.u32 %v35, 4294901760
    %v1330 = vsub.f32 %v35, %v1329
    %v1331 = vand.u32 %v1330, 4294901760
    %1332 = vmatpush.msra.mxu0 %v1331
    %v1333 = vand.u32 %v34, 4294901760
    %v1334 = vsub.f32 %v34, %v1333
    %v1335 = vand.u32 %v1334, 4294901760
    %1336 = vmatpush.msra.mxu0 %v1335
    %v1337 = vand.u32 %v33, 4294901760
    %v1338 = vsub.f32 %v33, %v1337
    %v1339 = vand.u32 %v1338, 4294901760
    %1340 = vmatpush.msra.mxu0 %v1339
    %v1341 = vand.u32 %v32, 4294901760
    %v1342 = vsub.f32 %v32, %v1341
    %v1343 = vand.u32 %v1342, 4294901760
    %1344 = vmatpush.msra.mxu0 %v1343
    %v1345 = vand.u32 %v31, 4294901760
    %v1346 = vsub.f32 %v31, %v1345
    %v1347 = vand.u32 %v1346, 4294901760
    %1348 = vmatpush.msra.mxu0 %v1347
    %v1349 = vand.u32 %v30, 4294901760
    %v1350 = vsub.f32 %v30, %v1349
    %v1351 = vand.u32 %v1350, 4294901760
    %1352 = vmatpush.msra.mxu0 %v1351
    %v1353 = vand.u32 %v29, 4294901760
    %v1354 = vsub.f32 %v29, %v1353
    %v1355 = vand.u32 %v1354, 4294901760
    %1356 = vmatpush.msra.mxu0 %v1355
    %v1357 = vand.u32 %v28, 4294901760
    %v1358 = vsub.f32 %v28, %v1357
    %v1359 = vand.u32 %v1358, 4294901760
    %1360 = vmatpush.msra.mxu0 %v1359
    %v1361 = vand.u32 %v27, 4294901760
    %v1362 = vsub.f32 %v27, %v1361
    %v1363 = vand.u32 %v1362, 4294901760
    %1364 = vmatpush.msra.mxu0 %v1363
    %v1365 = vand.u32 %v26, 4294901760
    %v1366 = vsub.f32 %v26, %v1365
    %v1367 = vand.u32 %v1366, 4294901760
    %1368 = vmatpush.msra.mxu0 %v1367
    %v1369 = vand.u32 %v25, 4294901760
    %v1370 = vsub.f32 %v25, %v1369
    %v1371 = vand.u32 %v1370, 4294901760
    %1372 = vmatpush.msra.mxu0 %v1371
    %v1373 = vand.u32 %v24, 4294901760
    %v1374 = vsub.f32 %v24, %v1373
    %v1375 = vand.u32 %v1374, 4294901760
    %1376 = vmatpush.msra.mxu0 %v1375
    %v1377 = vand.u32 %v23, 4294901760
    %v1378 = vsub.f32 %v23, %v1377
    %v1379 = vand.u32 %v1378, 4294901760
    %1380 = vmatpush.msra.mxu0 %v1379
    %v1381 = vand.u32 %v22, 4294901760
    %v1382 = vsub.f32 %v22, %v1381
    %v1383 = vand.u32 %v1382, 4294901760
    %1384 = vmatpush.msra.mxu0 %v1383
    %v1385 = vand.u32 %v21, 4294901760
    %v1386 = vsub.f32 %v21, %v1385
    %v1387 = vand.u32 %v1386, 4294901760
    %1388 = vmatpush.msra.mxu0 %v1387
    %v1389 = vand.u32 %v1087, 4294901760
    %1390 = vmatmul.f32.gmra.mxu0 %v1389
    %v1391 = vpop.f32.mrf.mxu0
    %v1392 = vadd.f32 %v1323, %v1391
    %1393 = vdwg.mxu0
    %v1394 = vand.u32 %v36, 4294901760
    %1395 = vmatpush.msra.mxu0 %v1394
    %v1396 = vand.u32 %v35, 4294901760
    %1397 = vmatpush.msra.mxu0 %v1396
    %v1398 = vand.u32 %v34, 4294901760
    %1399 = vmatpush.msra.mxu0 %v1398
    %v1400 = vand.u32 %v33, 4294901760
    %1401 = vmatpush.msra.mxu0 %v1400
    %v1402 = vand.u32 %v32, 4294901760
    %1403 = vmatpush.msra.mxu0 %v1402
    %v1404 = vand.u32 %v31, 4294901760
    %1405 = vmatpush.msra.mxu0 %v1404
    %v1406 = vand.u32 %v30, 4294901760
    %1407 = vmatpush.msra.mxu0 %v1406
    %v1408 = vand.u32 %v29, 4294901760
    %1409 = vmatpush.msra.mxu0 %v1408
    %v1410 = vand.u32 %v28, 4294901760
    %1411 = vmatpush.msra.mxu0 %v1410
    %v1412 = vand.u32 %v27, 4294901760
    %1413 = vmatpush.msra.mxu0 %v1412
    %v1414 = vand.u32 %v26, 4294901760
    %1415 = vmatpush.msra.mxu0 %v1414
    %v1416 = vand.u32 %v25, 4294901760
    %1417 = vmatpush.msra.mxu0 %v1416
    %v1418 = vand.u32 %v24, 4294901760
    %1419 = vmatpush.msra.mxu0 %v1418
    %v1420 = vand.u32 %v23, 4294901760
    %1421 = vmatpush.msra.mxu0 %v1420
    %v1422 = vand.u32 %v22, 4294901760
    %1423 = vmatpush.msra.mxu0 %v1422
    %v1424 = vand.u32 %v21, 4294901760
    %1425 = vmatpush.msra.mxu0 %v1424
    %v1426 = vand.u32 %v1087, 4294901760
    %1427 = vmatmul.f32.gmra.mxu0 %v1426
    %v1428 = vpop.f32.mrf.mxu0
    %v1429 = vadd.f32 %v1392, %v1428
    %1430 = vdwg.mxu0
    %v1431 = vadd.f32 %v1089, %v1429
    %v1432 = vtanh.pop %v1431
    %1433 = vst [vmem:[#allocation4] sm:$0xff] %v397
    %1434 = vst [vmem:[#allocation4 + $0x8] sm:$0xff] %v742
    %1435 = vst [vmem:[#allocation4 + $0x10] sm:$0xff] %v1087
    %1436 = vst [vmem:[#allocation4 + $0x18] sm:$0xff] %v1432
    %v1437 = vand.u32 %v52, 4294901760
    %1438 = vmatpush.msra.mxu0 %v1437
    %v1439 = vand.u32 %v51, 4294901760
    %1440 = vmatpush.msra.mxu0 %v1439
    %v1441 = vand.u32 %v50, 4294901760
    %1442 = vmatpush.msra.mxu0 %v1441
    %v1443 = vand.u32 %v49, 4294901760
    %1444 = vmatpush.msra.mxu0 %v1443
    %v1445 = vand.u32 %v48, 4294901760
    %1446 = vmatpush.msra.mxu0 %v1445
    %v1447 = vand.u32 %v47, 4294901760
    %1448 = vmatpush.msra.mxu0 %v1447
    %v1449 = vand.u32 %v46, 4294901760
    %1450 = vmatpush.msra.mxu0 %v1449
    %v1451 = vand.u32 %v45, 4294901760
    %1452 = vmatpush.msra.mxu0 %v1451
    %v1453 = vand.u32 %v44, 4294901760
    %1454 = vmatpush.msra.mxu0 %v1453
    %v1455 = vand.u32 %v43, 4294901760
    %1456 = vmatpush.msra.mxu0 %v1455
    %v1457 = vand.u32 %v42, 4294901760
    %1458 = vmatpush.msra.mxu0 %v1457
    %v1459 = vand.u32 %v41, 4294901760
    %1460 = vmatpush.msra.mxu0 %v1459
    %v1461 = vand.u32 %v40, 4294901760
    %1462 = vmatpush.msra.mxu0 %v1461
    %v1463 = vand.u32 %v39, 4294901760
    %1464 = vmatpush.msra.mxu0 %v1463
    %v1465 = vand.u32 %v38, 4294901760
    %1466 = vmatpush.msra.mxu0 %v1465
    %v1467 = vand.u32 %v37, 4294901760
    %1468 = vmatpush.msra.mxu0 %v1467
    %v1469 = vand.u32 %v397, 4294901760
    %v1470 = vsub.f32 %v397, %v1469
    %v1471 = vand.u32 %v1470, 4294901760
    %v1472 = vsub.f32 %v1470, %v1471
    %v1473 = vand.u32 %v1472, 4294901760
    %1474 = vmatmul.f32.gmra.mxu0 %v1473
    %v1475 = vpop.f32.mrf.mxu0
    %v1476 = vadd.f32 0.0, %v1475
    %v1477 = vand.u32 %v742, 4294901760
    %v1478 = vsub.f32 %v742, %v1477
    %v1479 = vand.u32 %v1478, 4294901760
    %v1480 = vsub.f32 %v1478, %v1479
    %v1481 = vand.u32 %v1480, 4294901760
    %1482 = vmatmul.f32.gmra.mxu0 %v1481
    %v1483 = vpop.f32.mrf.mxu0
    %v1484 = vadd.f32 0.0, %v1483
    %v1485 = vand.u32 %v1087, 4294901760
    %v1486 = vsub.f32 %v1087, %v1485
    %v1487 = vand.u32 %v1486, 4294901760
    %v1488 = vsub.f32 %v1486, %v1487
    %v1489 = vand.u32 %v1488, 4294901760
    %1490 = vmatmul.f32.gmra.mxu0 %v1489
    %v1491 = vpop.f32.mrf.mxu0
    %v1492 = vadd.f32 0.0, %v1491
    %v1493 = vand.u32 %v1432, 4294901760
    %v1494 = vsub.f32 %v1432, %v1493
    %v1495 = vand.u32 %v1494, 4294901760
    %v1496 = vsub.f32 %v1494, %v1495
    %v1497 = vand.u32 %v1496, 4294901760
    %1498 = vmatmul.f32.gmra.mxu0 %v1497
    %v1499 = vpop.f32.mrf.mxu0
    %v1500 = vadd.f32 0.0, %v1499
    %1501 = vdwg.mxu0
    %v1502 = vand.u32 %v52, 4294901760
    %v1503 = vsub.f32 %v52, %v1502
    %v1504 = vand.u32 %v1503, 4294901760
    %v1505 = vsub.f32 %v1503, %v1504
    %v1506 = vand.u32 %v1505, 4294901760
    %1507 = vmatpush.msra.mxu0 %v1506
    %v1508 = vand.u32 %v51, 4294901760
    %v1509 = vsub.f32 %v51, %v1508
    %v1510 = vand.u32 %v1509, 4294901760
    %v1511 = vsub.f32 %v1509, %v1510
    %v1512 = vand.u32 %v1511, 4294901760
    %1513 = vmatpush.msra.mxu0 %v1512
    %v1514 = vand.u32 %v50, 4294901760
    %v1515 = vsub.f32 %v50, %v1514
    %v1516 = vand.u32 %v1515, 4294901760
    %v1517 = vsub.f32 %v1515, %v1516
    %v1518 = vand.u32 %v1517, 4294901760
    %1519 = vmatpush.msra.mxu0 %v1518
    %v1520 = vand.u32 %v49, 4294901760
    %v1521 = vsub.f32 %v49, %v1520
    %v1522 = vand.u32 %v1521, 4294901760
    %v1523 = vsub.f32 %v1521, %v1522
    %v1524 = vand.u32 %v1523, 4294901760
    %1525 = vmatpush.msra.mxu0 %v1524
    %v1526 = vand.u32 %v48, 4294901760
    %v1527 = vsub.f32 %v48, %v1526
    %v1528 = vand.u32 %v1527, 4294901760
    %v1529 = vsub.f32 %v1527, %v1528
    %v1530 = vand.u32 %v1529, 4294901760
    %1531 = vmatpush.msra.mxu0 %v1530
    %v1532 = vand.u32 %v47, 4294901760
    %v1533 = vsub.f32 %v47, %v1532
    %v1534 = vand.u32 %v1533, 4294901760
    %v1535 = vsub.f32 %v1533, %v1534
    %v1536 = vand.u32 %v1535, 4294901760
    %1537 = vmatpush.msra.mxu0 %v1536
    %v1538 = vand.u32 %v46, 4294901760
    %v1539 = vsub.f32 %v46, %v1538
    %v1540 = vand.u32 %v1539, 4294901760
    %v1541 = vsub.f32 %v1539, %v1540
    %v1542 = vand.u32 %v1541, 4294901760
    %1543 = vmatpush.msra.mxu0 %v1542
    %v1544 = vand.u32 %v45, 4294901760
    %v1545 = vsub.f32 %v45, %v1544
    %v1546 = vand.u32 %v1545, 4294901760
    %v1547 = vsub.f32 %v1545, %v1546
    %v1548 = vand.u32 %v1547, 4294901760
    %1549 = vmatpush.msra.mxu0 %v1548
    %v1550 = vand.u32 %v44, 4294901760
    %v1551 = vsub.f32 %v44, %v1550
    %v1552 = vand.u32 %v1551, 4294901760
    %v1553 = vsub.f32 %v1551, %v1552
    %v1554 = vand.u32 %v1553, 4294901760
    %1555 = vmatpush.msra.mxu0 %v1554
    %v1556 = vand.u32 %v43, 4294901760
    %v1557 = vsub.f32 %v43, %v1556
    %v1558 = vand.u32 %v1557, 4294901760
    %v1559 = vsub.f32 %v1557, %v1558
    %v1560 = vand.u32 %v1559, 4294901760
    %1561 = vmatpush.msra.mxu0 %v1560
    %v1562 = vand.u32 %v42, 4294901760
    %v1563 = vsub.f32 %v42, %v1562
    %v1564 = vand.u32 %v1563, 4294901760
    %v1565 = vsub.f32 %v1563, %v1564
    %v1566 = vand.u32 %v1565, 4294901760
    %1567 = vmatpush.msra.mxu0 %v1566
    %v1568 = vand.u32 %v41, 4294901760
    %v1569 = vsub.f32 %v41, %v1568
    %v1570 = vand.u32 %v1569, 4294901760
    %v1571 = vsub.f32 %v1569, %v1570
    %v1572 = vand.u32 %v1571, 4294901760
    %1573 = vmatpush.msra.mxu0 %v1572
    %v1574 = vand.u32 %v40, 4294901760
    %v1575 = vsub.f32 %v40, %v1574
    %v1576 = vand.u32 %v1575, 4294901760
    %v1577 = vsub.f32 %v1575, %v1576
    %v1578 = vand.u32 %v1577, 4294901760
    %1579 = vmatpush.msra.mxu0 %v1578
    %v1580 = vand.u32 %v39, 4294901760
    %v1581 = vsub.f32 %v39, %v1580
    %v1582 = vand.u32 %v1581, 4294901760
    %v1583 = vsub.f32 %v1581, %v1582
    %v1584 = vand.u32 %v1583, 4294901760
    %1585 = vmatpush.msra.mxu0 %v1584
    %v1586 = vand.u32 %v38, 4294901760
    %v1587 = vsub.f32 %v38, %v1586
    %v1588 = vand.u32 %v1587, 4294901760
    %v1589 = vsub.f32 %v1587, %v1588
    %v1590 = vand.u32 %v1589, 4294901760
    %1591 = vmatpush.msra.mxu0 %v1590
    %v1592 = vand.u32 %v37, 4294901760
    %v1593 = vsub.f32 %v37, %v1592
    %v1594 = vand.u32 %v1593, 4294901760
    %v1595 = vsub.f32 %v1593, %v1594
    %v1596 = vand.u32 %v1595, 4294901760
    %1597 = vmatpush.msra.mxu0 %v1596
    %v1598 = vand.u32 %v397, 4294901760
    %1599 = vmatmul.f32.gmra.mxu0 %v1598
    %v1600 = vpop.f32.mrf.mxu0
    %v1601 = vadd.f32 %v1476, %v1600
    %v1602 = vand.u32 %v742, 4294901760
    %1603 = vmatmul.f32.gmra.mxu0 %v1602
    %v1604 = vpop.f32.mrf.mxu0
    %v1605 = vadd.f32 %v1484, %v1604
    %v1606 = vand.u32 %v1087, 4294901760
    %1607 = vmatmul.f32.gmra.mxu0 %v1606
    %v1608 = vpop.f32.mrf.mxu0
    %v1609 = vadd.f32 %v1492, %v1608
    %v1610 = vand.u32 %v1432, 4294901760
    %1611 = vmatmul.f32.gmra.mxu0 %v1610
    %v1612 = vpop.f32.mrf.mxu0
    %v1613 = vadd.f32 %v1500, %v1612
    %1614 = vdwg.mxu0
    %v1615 = vand.u32 %v52, 4294901760
    %v1616 = vsub.f32 %v52, %v1615
    %1617 = vmatpush.msra.mxu0 %v1616
    %v1618 = vand.u32 %v51, 4294901760
    %v1619 = vsub.f32 %v51, %v1618
    %1620 = vmatpush.msra.mxu0 %v1619
    %v1621 = vand.u32 %v50, 4294901760
    %v1622 = vsub.f32 %v50, %v1621
    %1623 = vmatpush.msra.mxu0 %v1622
    %v1624 = vand.u32 %v49, 4294901760
    %v1625 = vsub.f32 %v49, %v1624
    %1626 = vmatpush.msra.mxu0 %v1625
    %v1627 = vand.u32 %v48, 4294901760
    %v1628 = vsub.f32 %v48, %v1627
    %1629 = vmatpush.msra.mxu0 %v1628
    %v1630 = vand.u32 %v47, 4294901760
    %v1631 = vsub.f32 %v47, %v1630
    %1632 = vmatpush.msra.mxu0 %v1631
    %v1633 = vand.u32 %v46, 4294901760
    %v1634 = vsub.f32 %v46, %v1633
    %1635 = vmatpush.msra.mxu0 %v1634
    %v1636 = vand.u32 %v45, 4294901760
    %v1637 = vsub.f32 %v45, %v1636
    %1638 = vmatpush.msra.mxu0 %v1637
    %v1639 = vand.u32 %v44, 4294901760
    %v1640 = vsub.f32 %v44, %v1639
    %1641 = vmatpush.msra.mxu0 %v1640
    %v1642 = vand.u32 %v43, 4294901760
    %v1643 = vsub.f32 %v43, %v1642
    %1644 = vmatpush.msra.mxu0 %v1643
    %v1645 = vand.u32 %v42, 4294901760
    %v1646 = vsub.f32 %v42, %v1645
    %1647 = vmatpush.msra.mxu0 %v1646
    %v1648 = vand.u32 %v41, 4294901760
    %v1649 = vsub.f32 %v41, %v1648
    %1650 = vmatpush.msra.mxu0 %v1649
    %v1651 = vand.u32 %v40, 4294901760
    %v1652 = vsub.f32 %v40, %v1651
    %1653 = vmatpush.msra.mxu0 %v1652
    %v1654 = vand.u32 %v39, 4294901760
    %v1655 = vsub.f32 %v39, %v1654
    %1656 = vmatpush.msra.mxu0 %v1655
    %v1657 = vand.u32 %v38, 4294901760
    %v1658 = vsub.f32 %v38, %v1657
    %1659 = vmatpush.msra.mxu0 %v1658
    %v1660 = vand.u32 %v37, 4294901760
    %v1661 = vsub.f32 %v37, %v1660
    %1662 = vmatpush.msra.mxu0 %v1661
    %v1663 = vand.u32 %v397, 4294901760
    %v1664 = vsub.f32 %v397, %v1663
    %1665 = vmatmul.f32.gmra.mxu0 %v1664
    %v1666 = vpop.f32.mrf.mxu0
    %v1667 = vadd.f32 %v1601, %v1666
    %v1668 = vand.u32 %v742, 4294901760
    %v1669 = vsub.f32 %v742, %v1668
    %1670 = vmatmul.f32.gmra.mxu0 %v1669
    %v1671 = vpop.f32.mrf.mxu0
    %v1672 = vadd.f32 %v1605, %v1671
    %v1673 = vand.u32 %v1087, 4294901760
    %v1674 = vsub.f32 %v1087, %v1673
    %1675 = vmatmul.f32.gmra.mxu0 %v1674
    %v1676 = vpop.f32.mrf.mxu0
    %v1677 = vadd.f32 %v1609, %v1676
    %v1678 = vand.u32 %v1432, 4294901760
    %v1679 = vsub.f32 %v1432, %v1678
    %1680 = vmatmul.f32.gmra.mxu0 %v1679
    %v1681 = vpop.f32.mrf.mxu0
    %v1682 = vadd.f32 %v1613, %v1681
    %1683 = vdwg.mxu0
    %v1684 = vand.u32 %v52, 4294901760
    %1685 = vmatpush.msra.mxu0 %v1684
    %v1686 = vand.u32 %v51, 4294901760
    %1687 = vmatpush.msra.mxu0 %v1686
    %v1688 = vand.u32 %v50, 4294901760
    %1689 = vmatpush.msra.mxu0 %v1688
    %v1690 = vand.u32 %v49, 4294901760
    %1691 = vmatpush.msra.mxu0 %v1690
    %v1692 = vand.u32 %v48, 4294901760
    %1693 = vmatpush.msra.mxu0 %v1692
    %v1694 = vand.u32 %v47, 4294901760
    %1695 = vmatpush.msra.mxu0 %v1694
    %v1696 = vand.u32 %v46, 4294901760
    %1697 = vmatpush.msra.mxu0 %v1696
    %v1698 = vand.u32 %v45, 4294901760
    %1699 = vmatpush.msra.mxu0 %v1698
    %v1700 = vand.u32 %v44, 4294901760
    %1701 = vmatpush.msra.mxu0 %v1700
    %v1702 = vand.u32 %v43, 4294901760
    %1703 = vmatpush.msra.mxu0 %v1702
    %v1704 = vand.u32 %v42, 4294901760
    %1705 = vmatpush.msra.mxu0 %v1704
    %v1706 = vand.u32 %v41, 4294901760
    %1707 = vmatpush.msra.mxu0 %v1706
    %v1708 = vand.u32 %v40, 4294901760
    %1709 = vmatpush.msra.mxu0 %v1708
    %v1710 = vand.u32 %v39, 4294901760
    %1711 = vmatpush.msra.mxu0 %v1710
    %v1712 = vand.u32 %v38, 4294901760
    %1713 = vmatpush.msra.mxu0 %v1712
    %v1714 = vand.u32 %v37, 4294901760
    %1715 = vmatpush.msra.mxu0 %v1714
    %v1716 = vand.u32 %v397, 4294901760
    %v1717 = vsub.f32 %v397, %v1716
    %v1718 = vand.u32 %v1717, 4294901760
    %1719 = vmatmul.f32.gmra.mxu0 %v1718
    %v1720 = vpop.f32.mrf.mxu0
    %v1721 = vadd.f32 %v1667, %v1720
    %v1722 = vand.u32 %v742, 4294901760
    %v1723 = vsub.f32 %v742, %v1722
    %v1724 = vand.u32 %v1723, 4294901760
    %1725 = vmatmul.f32.gmra.mxu0 %v1724
    %v1726 = vpop.f32.mrf.mxu0
    %v1727 = vadd.f32 %v1672, %v1726
    %v1728 = vand.u32 %v1087, 4294901760
    %v1729 = vsub.f32 %v1087, %v1728
    %v1730 = vand.u32 %v1729, 4294901760
    %1731 = vmatmul.f32.gmra.mxu0 %v1730
    %v1732 = vpop.f32.mrf.mxu0
    %v1733 = vadd.f32 %v1677, %v1732
    %v1734 = vand.u32 %v1432, 4294901760
    %v1735 = vsub.f32 %v1432, %v1734
    %v1736 = vand.u32 %v1735, 4294901760
    %1737 = vmatmul.f32.gmra.mxu0 %v1736
    %v1738 = vpop.f32.mrf.mxu0
    %v1739 = vadd.f32 %v1682, %v1738
    %1740 = vdwg.mxu0
    %v1741 = vand.u32 %v52, 4294901760
    %v1742 = vsub.f32 %v52, %v1741
    %v1743 = vand.u32 %v1742, 4294901760
    %1744 = vmatpush.msra.mxu0 %v1743
    %v1745 = vand.u32 %v51, 4294901760
    %v1746 = vsub.f32 %v51, %v1745
    %v1747 = vand.u32 %v1746, 4294901760
    %1748 = vmatpush.msra.mxu0 %v1747
    %v1749 = vand.u32 %v50, 4294901760
    %v1750 = vsub.f32 %v50, %v1749
    %v1751 = vand.u32 %v1750, 4294901760
    %1752 = vmatpush.msra.mxu0 %v1751
    %v1753 = vand.u32 %v49, 4294901760
    %v1754 = vsub.f32 %v49, %v1753
    %v1755 = vand.u32 %v1754, 4294901760
    %1756 = vmatpush.msra.mxu0 %v1755
    %v1757 = vand.u32 %v48, 4294901760
    %v1758 = vsub.f32 %v48, %v1757
    %v1759 = vand.u32 %v1758, 4294901760
    %1760 = vmatpush.msra.mxu0 %v1759
    %v1761 = vand.u32 %v47, 4294901760
    %v1762 = vsub.f32 %v47, %v1761
    %v1763 = vand.u32 %v1762, 4294901760
    %1764 = vmatpush.msra.mxu0 %v1763
    %v1765 = vand.u32 %v46, 4294901760
    %v1766 = vsub.f32 %v46, %v1765
    %v1767 = vand.u32 %v1766, 4294901760
    %1768 = vmatpush.msra.mxu0 %v1767
    %v1769 = vand.u32 %v45, 4294901760
    %v1770 = vsub.f32 %v45, %v1769
    %v1771 = vand.u32 %v1770, 4294901760
    %1772 = vmatpush.msra.mxu0 %v1771
    %v1773 = vand.u32 %v44, 4294901760
    %v1774 = vsub.f32 %v44, %v1773
    %v1775 = vand.u32 %v1774, 4294901760
    %1776 = vmatpush.msra.mxu0 %v1775
    %v1777 = vand.u32 %v43, 4294901760
    %v1778 = vsub.f32 %v43, %v1777
    %v1779 = vand.u32 %v1778, 4294901760
    %1780 = vmatpush.msra.mxu0 %v1779
    %v1781 = vand.u32 %v42, 4294901760
    %v1782 = vsub.f32 %v42, %v1781
    %v1783 = vand.u32 %v1782, 4294901760
    %1784 = vmatpush.msra.mxu0 %v1783
    %v1785 = vand.u32 %v41, 4294901760
    %v1786 = vsub.f32 %v41, %v1785
    %v1787 = vand.u32 %v1786, 4294901760
    %1788 = vmatpush.msra.mxu0 %v1787
    %v1789 = vand.u32 %v40, 4294901760
    %v1790 = vsub.f32 %v40, %v1789
    %v1791 = vand.u32 %v1790, 4294901760
    %1792 = vmatpush.msra.mxu0 %v1791
    %v1793 = vand.u32 %v39, 4294901760
    %v1794 = vsub.f32 %v39, %v1793
    %v1795 = vand.u32 %v1794, 4294901760
    %1796 = vmatpush.msra.mxu0 %v1795
    %v1797 = vand.u32 %v38, 4294901760
    %v1798 = vsub.f32 %v38, %v1797
    %v1799 = vand.u32 %v1798, 4294901760
    %1800 = vmatpush.msra.mxu0 %v1799
    %v1801 = vand.u32 %v37, 4294901760
    %v1802 = vsub.f32 %v37, %v1801
    %v1803 = vand.u32 %v1802, 4294901760
    %1804 = vmatpush.msra.mxu0 %v1803
    %v1805 = vand.u32 %v397, 4294901760
    %1806 = vmatmul.f32.gmra.mxu0 %v1805
    %v1807 = vpop.f32.mrf.mxu0
    %v1808 = vadd.f32 %v1721, %v1807
    %v1809 = vand.u32 %v742, 4294901760
    %1810 = vmatmul.f32.gmra.mxu0 %v1809
    %v1811 = vpop.f32.mrf.mxu0
    %v1812 = vadd.f32 %v1727, %v1811
    %v1813 = vand.u32 %v1087, 4294901760
    %1814 = vmatmul.f32.gmra.mxu0 %v1813
    %v1815 = vpop.f32.mrf.mxu0
    %v1816 = vadd.f32 %v1733, %v1815
    %v1817 = vand.u32 %v1432, 4294901760
    %1818 = vmatmul.f32.gmra.mxu0 %v1817
    %v1819 = vpop.f32.mrf.mxu0
    %v1820 = vadd.f32 %v1739, %v1819
    %1821 = vdwg.mxu0
    %v1822 = vand.u32 %v52, 4294901760
    %1823 = vmatpush.msra.mxu0 %v1822
    %v1824 = vand.u32 %v51, 4294901760
    %1825 = vmatpush.msra.mxu0 %v1824
    %v1826 = vand.u32 %v50, 4294901760
    %1827 = vmatpush.msra.mxu0 %v1826
    %v1828 = vand.u32 %v49, 4294901760
    %1829 = vmatpush.msra.mxu0 %v1828
    %v1830 = vand.u32 %v48, 4294901760
    %1831 = vmatpush.msra.mxu0 %v1830
    %v1832 = vand.u32 %v47, 4294901760
    %1833 = vmatpush.msra.mxu0 %v1832
    %v1834 = vand.u32 %v46, 4294901760
    %1835 = vmatpush.msra.mxu0 %v1834
    %v1836 = vand.u32 %v45, 4294901760
    %1837 = vmatpush.msra.mxu0 %v1836
    %v1838 = vand.u32 %v44, 4294901760
    %1839 = vmatpush.msra.mxu0 %v1838
    %v1840 = vand.u32 %v43, 4294901760
    %1841 = vmatpush.msra.mxu0 %v1840
    %v1842 = vand.u32 %v42, 4294901760
    %1843 = vmatpush.msra.mxu0 %v1842
    %v1844 = vand.u32 %v41, 4294901760
    %1845 = vmatpush.msra.mxu0 %v1844
    %v1846 = vand.u32 %v40, 4294901760
    %1847 = vmatpush.msra.mxu0 %v1846
    %v1848 = vand.u32 %v39, 4294901760
    %1849 = vmatpush.msra.mxu0 %v1848
    %v1850 = vand.u32 %v38, 4294901760
    %1851 = vmatpush.msra.mxu0 %v1850
    %v1852 = vand.u32 %v37, 4294901760
    %1853 = vmatpush.msra.mxu0 %v1852
    %v1854 = vand.u32 %v397, 4294901760
    %1855 = vmatmul.f32.gmra.mxu0 %v1854
    %v1856 = vpop.f32.mrf.mxu0
    %v1857 = vadd.f32 %v1808, %v1856
    %v1858 = vand.u32 %v742, 4294901760
    %1859 = vmatmul.f32.gmra.mxu0 %v1858
    %v1860 = vpop.f32.mrf.mxu0
    %v1861 = vadd.f32 %v1812, %v1860
    %v1862 = vand.u32 %v1087, 4294901760
    %1863 = vmatmul.f32.gmra.mxu0 %v1862
    %v1864 = vpop.f32.mrf.mxu0
    %v1865 = vadd.f32 %v1816, %v1864
    %v1866 = vand.u32 %v1432, 4294901760
    %1867 = vmatmul.f32.gmra.mxu0 %v1866
    %v1868 = vpop.f32.mrf.mxu0
    %v1869 = vadd.f32 %v1820, %v1868
    %1870 = vdwg.mxu0
    %1871 = vmax.xlane.f32.xlu0 %v1857
    %v1872 = vpop.xlane.xlu0 %1871
    %1873 = vmax.xlane.f32.xlu0 %v1861
    %v1874 = vpop.xlane.xlu0 %1873
    %1875 = vmax.xlane.f32.xlu0 %v1865
    %v1876 = vpop.xlane.xlu0 %1875
    %1877 = vmax.xlane.f32.xlu0 %v1869
    %v1878 = vpop.xlane.xlu0 %1877
    %v1879 = vsub.f32 %v1857, %v1872
    %v1880 = vsub.f32 %v1861, %v1874
    %v1881 = vsub.f32 %v1865, %v1876
    %v1882 = vsub.f32 %v1869, %v1878
    %v1883 = vmul.f32 %v1879, 1.442695
    %v1884 = vpow.pop %v1883
    %v1885 = vmul.f32 %v1880, 1.442695
    %v1886 = vpow.pop %v1885
    %v1887 = vmul.f32 %v1881, 1.442695
    %v1888 = vpow.pop %v1887
    %v1889 = vmul.f32 %v1882, 1.442695
    %v1890 = vpow.pop %v1889
    %1891 = vadd.xlane.f32.xlu0 %v1884
    %v1892 = vpop.xlane.xlu0 %1891
    %1893 = vadd.xlane.f32.xlu0 %v1886
    %v1894 = vpop.xlane.xlu0 %1893
    %1895 = vadd.xlane.f32.xlu0 %v1888
    %v1896 = vpop.xlane.xlu0 %1895
    %1897 = vadd.xlane.f32.xlu0 %v1890
    %v1898 = vpop.xlane.xlu0 %1897
    %v1899 = vrcp.pop %v1892
    %v1900 = vmul.f32 %v1892, %v1899
    %v1901 = vsub.f32 1.0, %v1900
    %v1902 = vmul.f32 %v1899, %v1901
    %v1903 = vadd.f32 %v1899, %v1902
    %vm1904 = vweird.f32 %v1892
    %vm1905 = vweird.f32 %v1899
    %vm1906 = vmor %vm1904, %vm1905
    %v1907 = vsel %vm1906, %v1899, %v1903
    %v1908 = vand.u32 2147483647, %v1892
    %vm1909 = vcmp.eq.f32.partialorder %v1908, 8.507059e+37
    %v1910 = vand.u32 %v1892, 2147483648
    %v1911 = vor.u32 1.1754944e-38, %v1910
    %v1912 = vsel %vm1909, %v1911, %v1907
    %v1913 = vmul.f32 %v1884, %v1912
    %v1914 = vrcp.pop %v1894
    %v1915 = vmul.f32 %v1894, %v1914
    %v1916 = vsub.f32 1.0, %v1915
    %v1917 = vmul.f32 %v1914, %v1916
    %v1918 = vadd.f32 %v1914, %v1917
    %vm1919 = vweird.f32 %v1894
    %vm1920 = vweird.f32 %v1914
    %vm1921 = vmor %vm1919, %vm1920
    %v1922 = vsel %vm1921, %v1914, %v1918
    %v1923 = vand.u32 2147483647, %v1894
    %vm1924 = vcmp.eq.f32.partialorder %v1923, 8.507059e+37
    %v1925 = vand.u32 %v1894, 2147483648
    %v1926 = vor.u32 1.1754944e-38, %v1925
    %v1927 = vsel %vm1924, %v1926, %v1922
    %v1928 = vmul.f32 %v1886, %v1927
    %v1929 = vrcp.pop %v1896
    %v1930 = vmul.f32 %v1896, %v1929
    %v1931 = vsub.f32 1.0, %v1930
    %v1932 = vmul.f32 %v1929, %v1931
    %v1933 = vadd.f32 %v1929, %v1932
    %vm1934 = vweird.f32 %v1896
    %vm1935 = vweird.f32 %v1929
    %vm1936 = vmor %vm1934, %vm1935
    %v1937 = vsel %vm1936, %v1929, %v1933
    %v1938 = vand.u32 2147483647, %v1896
    %vm1939 = vcmp.eq.f32.partialorder %v1938, 8.507059e+37
    %v1940 = vand.u32 %v1896, 2147483648
    %v1941 = vor.u32 1.1754944e-38, %v1940
    %v1942 = vsel %vm1939, %v1941, %v1937
    %v1943 = vmul.f32 %v1888, %v1942
    %v1944 = vrcp.pop %v1898
    %v1945 = vmul.f32 %v1898, %v1944
    %v1946 = vsub.f32 1.0, %v1945
    %v1947 = vmul.f32 %v1944, %v1946
    %v1948 = vadd.f32 %v1944, %v1947
    %vm1949 = vweird.f32 %v1898
    %vm1950 = vweird.f32 %v1944
    %vm1951 = vmor %vm1949, %vm1950
    %v1952 = vsel %vm1951, %v1944, %v1948
    %v1953 = vand.u32 2147483647, %v1898
    %vm1954 = vcmp.eq.f32.partialorder %v1953, 8.507059e+37
    %v1955 = vand.u32 %v1898, 2147483648
    %v1956 = vor.u32 1.1754944e-38, %v1955
    %v1957 = vsel %vm1954, %v1956, %v1952
    %v1958 = vmul.f32 %v1890, %v1957
    %1959 = vst [vmem:[#allocation2] sm:$0xff] %v1913
    %1960 = vst [vmem:[#allocation2 + $0x8] sm:$0xff] %v1928
    %1961 = vst [vmem:[#allocation2 + $0x10] sm:$0xff] %v1943
    %1962 = vst [vmem:[#allocation2 + $0x18] sm:$0xff] %v1958
    // Predicated region
    $region18: #{packed_forward.1} parent=1 // pred_check
      _
    $region19: #{packed_forward.1} parent=1 // pred_check_branch
      %1964 = sbr.rel (0) target = $region21
    $region20: #{packed_forward.1} parent=1 // pred_region
      %1966 = vsyncadd [#allocation3], 0
      %s1967 = sshll.u32 [#allocation2], 4
      %s1968 = int_to_ptr.vmem [resolvable:$true] %s1967
      %s1969 = sshll.u32 %s4, 4
      %s1970 = int_to_ptr.hbm [resolvable:$true] %s1969
      %1975 = dma.vmem_to_hbm [thread:$0]  %s1968, 512, %s1970, [#allocation3], 128, 128, 8
    $region21: #{packed_forward.1} parent=1 // pred_fallthru
      _
    // Predicated region
    $region22: #{packed_forward.1} parent=1 // pred_check
      _
    $region23: #{packed_forward.1} parent=1 // pred_check_branch
      %1977 = sbr.rel (0) target = $region25
    $region24: #{packed_forward.1} parent=1 // pred_region
      %1979 = vsyncadd [#allocation5], 0
      %s1980 = sshll.u32 [#allocation4], 4
      %s1981 = int_to_ptr.vmem [resolvable:$true] %s1980
      %s1982 = sshll.u32 %s5, 4
      %s1983 = int_to_ptr.hbm [resolvable:$true] %s1982
      %1988 = dma.vmem_to_hbm [thread:$0]  %s1981, 512, %s1983, [#allocation5], 128, 128, 8
    $region25: #{packed_forward.1} parent=1 // pred_fallthru
      _
    // Predicated region
    $region26: #{packed_forward.1} parent=1 // pred_check
      _
    $region27: #{packed_forward.1} parent=1 // pred_check_branch
      %1990 = sbr.rel (0) target = $region29
    $region28: #{packed_forward.1} parent=1 // pred_region
      %1992 = dma.done [#allocation3], 512
    $region29: #{packed_forward.1} parent=1 // pred_fallthru
      _
    // Predicated region
    $region30: #{packed_forward.1} parent=1 // pred_check
      _
    $region31: #{packed_forward.1} parent=1 // pred_check_branch
      %1994 = sbr.rel (0) target = $region33
    $region32: #{packed_forward.1} parent=1 // pred_region
      %1996 = dma.done [#allocation5], 512
    $region33: #{packed_forward.1} parent=1 // pred_fallthru
      _
    %1997 = vsyncpa [#allocation3], 1
    %1998 = vsyncpa [#allocation5], 1

</llo_original>
